<compile_context>
chip_gen: v7x
topology: tpu7x:2x2x1
jax: 0.10.0
libtpu: 0.0.40
codegen_flags: <defaults>
</compile_context>

<pallas_src>
import functools

import numpy as np

import jax
import jax.numpy as jnp
from jax import lax
from jax.experimental import pallas as pl
from jax.experimental.pallas import tpu as pltpu


# ----------------------------------------------------------------------------
# Model configuration (small demo instantiation of MiddleBlock2D)
# ----------------------------------------------------------------------------
C_IN = 4          # in_c == out_c
C_TC = 4          # time_cond_channels
C_OUT = C_IN
CP = 8            # channel dim padded to one sublane group (C_OUT <= 8)
T_CH = 32         # time_channels
T_HID = 128       # hidden width of time_mlp (per the spec)


def _images_per_step(n):
    """Largest divisor of n that is <= 8, preferring >= 2 grid steps (megacore)."""
    cap = min(8, n if n < 2 else max(1, n // 2))
    for nb in range(cap, 0, -1):
        if n % nb == 0:
            return nb
    return 1


# ----------------------------------------------------------------------------
# Fused ConvBlock2D kernel:
#   phase 1: conv1 (one tap-packed dot) -> FiLM(+b1) -> SiLU -> interior mask -> VMEM scratch
#   phase 2: conv2 (9 lane-rolled dots) -> +residual(+b2) -> lane-dense channel-major store
# ----------------------------------------------------------------------------
def _convblock_kernel(x_ref, res_ref, w1_ref, w2_ref, mult_ref, add_ref, mask_ref,
                      out_ref, h_ref, *, nb, mpad, wp, c_out):
    L = nb * mpad
    cp = h_ref.shape[0]

    # ---- phase 1: conv1 over every padded-grid position of the whole image block ----
    # One MXU dot: (CP, 9*C1) x (9*C1, NB*mpad) -> (CP, NB*mpad), f32 accumulation.
    acc1 = jnp.dot(w1_ref[...], x_ref[...], preferred_element_type=jnp.float32)

    mask = mask_ref[...]                                  # (1, mpad), broadcasts over sublanes
    for n in range(nb):                                   # static unroll, nb <= 8
        lo = n * mpad
        span = acc1[:, lo:lo + mpad]
        # FiLM; conv1 bias is pre-folded into add_ref (add' = add + b1 * mult).
        span = span * mult_ref[n] + add_ref[n]            # (CP, mpad) * (CP,1) + (CP,1)
        # SiLU.  NOTE: pl.reciprocal(1+exp(-x), approx=True) would move the divide onto
        # the EUP slot but its approximation error risks the 5e-3 reference tolerance,
        # so the exact form is kept.
        span = span * (1.0 / (1.0 + jnp.exp(-span)))
        # Interior mask: guard ring / lane padding become exact zeros (= conv2's padding).
        h_ref[:, lo:lo + mpad] = span * mask

    # ---- phase 2: conv2 as 9 accumulating dots on lane-rolled views of the scratch ----
    h = h_ref[...]                                        # (CP, L) f32
    acc2 = jnp.zeros((cp, L), jnp.float32)
    for dy in range(3):
        for dx in range(3):
            d = (dy - 1) * wp + (dx - 1)                  # tap offset in the padded pixel grid
            ht = h if d == 0 else pltpu.roll(h, shift=(-d) % L, axis=1)
            # Wrap-around only contaminates guard-ring / pad lanes, which are cropped
            # by the wrapper; interior outputs never read outside their own image span.
            acc2 = acc2 + jnp.dot(w2_ref[dy * 3 + dx], ht.astype(jnp.bfloat16),
                                  preferred_element_type=jnp.float32)

    # ---- residual (+ pre-folded conv2 bias) and lane-dense channel-major store ----
    for n in range(nb):
        lo = n * mpad
        out_ref[n] = (acc2[:c_out, lo:lo + mpad]
                      + res_ref[n]).astype(out_ref.dtype)


# ----------------------------------------------------------------------------
# Wrapper (NCHW in / NCHW out, PyTorch-style)
# ----------------------------------------------------------------------------
def middle_block_2d_forward(params, x_nchw, time, time_cond_nchw):
    N, C, H, W = x_nchw.shape
    Ctc = time_cond_nchw.shape[1]
    C1 = C + Ctc
    assert C <= CP
    Hp, Wp = H + 2, W + 2
    M_img = Hp * Wp                                   # padded-grid pixels per image
    MPAD = ((M_img + 127) // 128) * 128               # lane-padded per-image pixel count
    NB = _images_per_step(N)                          # images per grid step
    NBLK = N // NB
    L = NB * MPAD

    # TODO(synk): delay_x / delay_time_cond / delay_res are CachedPadding2d with zero delay
    # in this non-streaming config (target_delay == cumulative_delay == 0) and are treated
    # as identities; the streaming-cache bookkeeping is not modeled.

    # ---- conv1 operand: SiLU hoisted out of the kernel (SiLU(0)=0 keeps zero padding
    #      valid), 3x3 taps packed into the contraction dim (K = 9*C1), pixels in lanes,
    #      bf16, NB images concatenated along the lane axis. ----
    x_nhwc = jnp.transpose(x_nchw, (0, 2, 3, 1)).astype(jnp.float32)
    tc_nhwc = jnp.transpose(time_cond_nchw, (0, 2, 3, 1)).astype(jnp.float32)
    act = jax.nn.silu(jnp.concatenate([x_nhwc, tc_nhwc], axis=-1))         # (N, H, W, C1)
    act_p = jnp.pad(act, ((0, 0), (2, 2), (2, 2), (0, 0)))                 # halo for guard rows
    taps = [act_p[:, dy:dy + Hp, dx:dx + Wp, :] for dy in range(3) for dx in range(3)]
    xp = jnp.stack(taps, axis=1)                                           # (N, 9, Hp, Wp, C1)
    xp = jnp.transpose(xp, (0, 1, 4, 2, 3)).reshape(N, 9 * C1, M_img)      # rows k = tap*C1+ci
    xp = jnp.pad(xp, ((0, 0), (0, 0), (0, MPAD - M_img)))
    xp = xp.reshape(NBLK, NB, 9 * C1, MPAD).transpose(0, 2, 1, 3).reshape(NBLK, 9 * C1, L)
    xp = xp.astype(jnp.bfloat16)

    # ---- residual in channel-major padded-grid layout (lane-dense), conv2 bias folded ----
    res = jnp.pad(x_nchw.astype(jnp.float32), ((0, 0), (0, 0), (1, 1), (1, 1)))
    res = res.reshape(N, C, M_img)
    res = jnp.pad(res, ((0, 0), (0, 0), (0, MPAD - M_img)))
    res = res + params["b2"].astype(jnp.float32)[None, :, None]
    res = res.reshape(NBLK, NB, C, MPAD)

    # ---- time-conditioning MLP (tiny -> plain XLA); conv1 bias folded into the FiLM add ----
    t = jax.nn.silu(time @ params["tm1_w"] + params["tm1_b"])
    t = t @ params["tm2_w"] + params["tm2_b"]                              # (N, 2C)
    mult, add = t[:, :C], t[:, C:]
    add = add + mult * params["b1"][None, :]                               # fold b1
    mult_p = jnp.zeros((N, CP), jnp.float32).at[:, :C].set(mult).reshape(NBLK, NB, CP, 1)
    add_p = jnp.zeros((N, CP), jnp.float32).at[:, :C].set(add).reshape(NBLK, NB, CP, 1)

    # ---- static interior mask: 1 on real pixels, 0 on the guard ring / lane padding ----
    q = np.arange(MPAD)
    rr, cc = q // Wp, q % Wp
    mask_np = ((q < M_img) & (rr >= 1) & (rr < Hp - 1) & (cc >= 1) & (cc < Wp - 1))
    mask = jnp.asarray(mask_np.astype(np.float32)).reshape(1, MPAD)

    kernel = functools.partial(_convblock_kernel, nb=NB, mpad=MPAD, wp=Wp, c_out=C)
    out = pl.pallas_call(
        kernel,
        out_shape=jax.ShapeDtypeStruct((NBLK, NB, C, MPAD), jnp.float32),
        grid=(NBLK,),
        in_specs=[
            pl.BlockSpec((None, 9 * C1, L), lambda g: (g, 0, 0)),       # tap-packed input
            pl.BlockSpec((None, NB, C, MPAD), lambda g: (g, 0, 0, 0)),  # residual (+b2)
            pl.BlockSpec((CP, 9 * C1), lambda g: (0, 0)),               # conv1 weights (resident)
            pl.BlockSpec((9, CP, CP), lambda g: (0, 0, 0)),             # conv2 weights (resident)
            pl.BlockSpec((None, NB, CP, 1), lambda g: (g, 0, 0, 0)),    # FiLM mult
            pl.BlockSpec((None, NB, CP, 1), lambda g: (g, 0, 0, 0)),    # FiLM add (+b1 folded)
            pl.BlockSpec((1, MPAD), lambda g: (0, 0)),                  # interior mask (resident)
        ],
        out_specs=pl.BlockSpec((None, NB, C, MPAD), lambda g: (g, 0, 0, 0)),
        scratch_shapes=[pltpu.VMEM((CP, L), jnp.float32)],              # intermediate (VMEM only)
        compiler_params=pltpu.CompilerParams(dimension_semantics=("parallel",)),
    )(xp, res, params["w1_k"], params["w2_k"], mult_p, add_p, mask)

    # Crop the padded pixel grid; the output is already channel-major -> no final transpose.
    out = out.reshape(N, C, MPAD)[:, :, :M_img].reshape(N, C, Hp, Wp)
    return out[:, :, 1:1 + H, 1:1 + W]


# ----------------------------------------------------------------------------
# Parameters
# ----------------------------------------------------------------------------
def init_params(key):
    ks = jax.random.split(key, 8)

    def dense(k, shape, fan_in):
        return jax.random.normal(k, shape, jnp.float32) / jnp.sqrt(fan_in)

    c1 = C_IN + C_TC
    w1 = dense(ks[0], (3, 3, c1, C_OUT), 9.0 * c1).astype(jnp.bfloat16)     # HWIO
    w2 = dense(ks[1], (3, 3, C_OUT, C_OUT), 9.0 * C_OUT).astype(jnp.bfloat16)
    b1 = 0.05 * jax.random.normal(ks[2], (C_OUT,), jnp.float32)
    b2 = 0.05 * jax.random.normal(ks[3], (C_OUT,), jnp.float32)
    tm1_w = dense(ks[4], (T_CH, T_HID), T_CH)
    tm1_b = jnp.zeros((T_HID,), jnp.float32)
    tm2_w = dense(ks[5], (T_HID, 2 * C_OUT), T_HID)
    tm2_b = 0.05 * jax.random.normal(ks[6], (2 * C_OUT,), jnp.float32)

    # Pre-packed kernel weights (channels in sublanes):
    #   conv1: (CP, 9*C1) -- rows = output channels (padded to 8), cols = tap-major K.
    #   conv2: (9, CP, CP) -- w2_k[tap, c_out, c_in], both channel dims padded to 8.
    w1_k = jnp.zeros((CP, 9 * c1), jnp.bfloat16).at[:C_OUT, :].set(
        jnp.transpose(w1.reshape(9 * c1, C_OUT)))
    w2_k = jnp.zeros((9, CP, CP), jnp.bfloat16).at[:, :C_OUT, :C_OUT].set(
        jnp.transpose(w2.reshape(9, C_OUT, C_OUT), (0, 2, 1)))

    return dict(w1=w1, w2=w2, b1=b1, b2=b2,
                tm1_w=tm1_w, tm1_b=tm1_b, tm2_w=tm2_w, tm2_b=tm2_b,
                w1_k=w1_k, w2_k=w2_k)


# ----------------------------------------------------------------------------
# Pure-JAX reference (mirrors the kernel's bf16-rounded MXU operands)
# ----------------------------------------------------------------------------
def middle_block_2d_reference(params, x_nchw, time, time_cond_nchw):
    x = jnp.transpose(x_nchw, (0, 2, 3, 1)).astype(jnp.float32)
    tc = jnp.transpose(time_cond_nchw, (0, 2, 3, 1)).astype(jnp.float32)
    C = x.shape[-1]

    def conv3x3(a, w_hwio):
        a = a.astype(jnp.bfloat16).astype(jnp.float32)   # mirror bf16 MXU operand rounding
        return lax.conv_general_dilated(
            a, w_hwio.astype(jnp.float32), (1, 1), "SAME",
            dimension_numbers=("NHWC", "HWIO", "NHWC"),
            precision=lax.Precision.HIGHEST)

    h = conv3x3(jax.nn.silu(jnp.concatenate([x, tc], -1)), params["w1"]) + params["b1"]
    t = jax.nn.silu(time @ params["tm1_w"] + params["tm1_b"]) @ params["tm2_w"] + params["tm2_b"]
    mult, add = t[:, :C], t[:, C:]
    h = h * mult[:, None, None, :] + add[:, None, None, :]
    h = jax.nn.silu(h)
    out = conv3x3(h, params["w2"]) + params["b2"] + x
    return jnp.transpose(out, (0, 3, 1, 2))


if __name__ == "__main__":
    key = jax.random.PRNGKey(0)
    kp, kx, kc, kt = jax.random.split(key, 4)
    params = init_params(kp)

    N, H, W = 2, 16, 16
    x = jax.random.normal(kx, (N, C_IN, H, W), jnp.float32)          # NCHW
    time_cond = jax.random.normal(kc, (N, C_TC, H, W), jnp.float32)  # NCHW
    time = jax.random.normal(kt, (N, T_CH), jnp.float32)

    out = jax.block_until_ready(
        jax.jit(middle_block_2d_forward)(params, x, time, time_cond))
    assert out.shape == (N, C_IN, H, W), out.shape
    assert bool(jnp.all(jnp.isfinite(out)))

    ref = jax.block_until_ready(
        jax.jit(middle_block_2d_reference)(params, x, time, time_cond))
    max_err = float(jnp.max(jnp.abs(out - ref)))
    assert max_err < 5e-3, f"max abs err vs reference: {max_err}"

    print("KERNEL_OK")
</pallas_src>

<mosaic_0001>
module attributes {stable_mosaic.version = 11 : i64} {
  func.func @_convblock_kernel(%arg0: i32, %arg1: memref<1x72x384xbf16, #tpu.memory_space<vmem>>, %arg2: memref<1x1x4x384xf32, #tpu.memory_space<vmem>>, %arg3: memref<8x72xbf16, #tpu.memory_space<vmem>>, %arg4: memref<9x8x8xbf16, #tpu.memory_space<vmem>>, %arg5: memref<1x1x8x1xf32, #tpu.memory_space<vmem>>, %arg6: memref<1x1x8x1xf32, #tpu.memory_space<vmem>>, %arg7: memref<1x384xf32, #tpu.memory_space<vmem>>, %arg8: memref<1x1x4x384xf32, #tpu.memory_space<vmem>>, %arg9: memref<8x384xf32, #tpu.memory_space<vmem>>) attributes {dimension_semantics = [#tpu.dimension_semantics<parallel>], iteration_bounds = array<i64: 2>, scalar_prefetch = 0 : i64, scratch_operands = 1 : i64, tpu.core_type = #tpu.core_type<tc>, window_params = [{transform_indices = @transform_0, window_bounds = array<i64: 1, 72, 384>}, {transform_indices = @transform_1, window_bounds = array<i64: 1, 1, 4, 384>}, {pipeline_mode = #tpu.pipeline_mode<synchronous>, transform_indices = @transform_2, window_bounds = array<i64: 8, 72>}, {pipeline_mode = #tpu.pipeline_mode<synchronous>, transform_indices = @transform_3, window_bounds = array<i64: 9, 8, 8>}, {transform_indices = @transform_4, window_bounds = array<i64: 1, 1, 8, 1>}, {transform_indices = @transform_5, window_bounds = array<i64: 1, 1, 8, 1>}, {pipeline_mode = #tpu.pipeline_mode<synchronous>, transform_indices = @transform_6, window_bounds = array<i64: 1, 384>}, {transform_indices = @transform_7, window_bounds = array<i64: 1, 1, 4, 384>}]} {
    %c0 = arith.constant 0 : index
    %c0_0 = arith.constant 0 : index
    %0 = vector.load %arg3[%c0, %c0_0] : memref<8x72xbf16, #tpu.memory_space<vmem>>, vector<8x72xbf16>
    %c0_1 = arith.constant 0 : index
    %c0_2 = arith.constant 0 : index
    %c0_3 = arith.constant 0 : index
    %1 = vector.load %arg1[%c0_1, %c0_2, %c0_3] : memref<1x72x384xbf16, #tpu.memory_space<vmem>>, vector<1x72x384xbf16>
    %2 = vector.shape_cast %1 : vector<1x72x384xbf16> to vector<72x384xbf16>
    %cst = arith.constant dense<0.000000e+00> : vector<8x384xf32>
    %3 = tpu.matmul %0, %2, %cst {dimension_numbers = #tpu.dot_dimension_numbers<[1], [0], [0], [1], [0, 0, 1, 1], [], []>} : vector<8x72xbf16>, vector<72x384xbf16>, vector<8x384xf32> -> vector<8x384xf32>
    %c0_4 = arith.constant 0 : index
    %c0_5 = arith.constant 0 : index
    %4 = vector.load %arg7[%c0_4, %c0_5] : memref<1x384xf32, #tpu.memory_space<vmem>>, vector<1x384xf32>
    %c0_6 = arith.constant 0 : index
    %c0_7 = arith.constant 0 : index
    %c0_8 = arith.constant 0 : index
    %c0_9 = arith.constant 0 : index
    %5 = vector.load %arg5[%c0_6, %c0_7, %c0_8, %c0_9] : memref<1x1x8x1xf32, #tpu.memory_space<vmem>>, vector<1x1x8x1xf32>
    %6 = vector.shape_cast %5 : vector<1x1x8x1xf32> to vector<8x1xf32>
    %7 = vector.broadcast %6 : vector<8x1xf32> to vector<8x384xf32>
    %8 = arith.mulf %3, %7 : vector<8x384xf32>
    %c0_10 = arith.constant 0 : index
    %c0_11 = arith.constant 0 : index
    %c0_12 = arith.constant 0 : index
    %c0_13 = arith.constant 0 : index
    %9 = vector.load %arg6[%c0_10, %c0_11, %c0_12, %c0_13] : memref<1x1x8x1xf32, #tpu.memory_space<vmem>>, vector<1x1x8x1xf32>
    %10 = vector.shape_cast %9 : vector<1x1x8x1xf32> to vector<8x1xf32>
    %11 = vector.broadcast %10 : vector<8x1xf32> to vector<8x384xf32>
    %12 = arith.addf %8, %11 : vector<8x384xf32>
    %cst_14 = arith.constant 0.000000e+00 : f32
    %13 = vector.broadcast %cst_14 : f32 to vector<8x384xf32>
    %14 = arith.subf %13, %12 : vector<8x384xf32>
    %15 = math.exp %14 : vector<8x384xf32>
    %cst_15 = arith.constant 1.000000e+00 : f32
    %16 = vector.broadcast %cst_15 : f32 to vector<8x384xf32>
    %17 = arith.addf %16, %15 : vector<8x384xf32>
    %cst_16 = arith.constant 1.000000e+00 : f32
    %18 = vector.broadcast %cst_16 : f32 to vector<8x384xf32>
    %19 = arith.divf %18, %17 : vector<8x384xf32>
    %20 = arith.mulf %12, %19 : vector<8x384xf32>
    %21 = vector.broadcast %4 : vector<1x384xf32> to vector<8x384xf32>
    %22 = arith.mulf %20, %21 : vector<8x384xf32>
    %c0_17 = arith.constant 0 : index
    %c0_18 = arith.constant 0 : index
    %23 = vector.load %arg9[%c0_17, %c0_18] : memref<8x384xf32, #tpu.memory_space<vmem>>, vector<8x384xf32>
    tpu.vector_store %arg9[%c0_17, %c0_18], %22 {strides = array<i32>} : memref<8x384xf32, #tpu.memory_space<vmem>>, vector<8x384xf32>,
    %c0_19 = arith.constant 0 : index
    %c0_20 = arith.constant 0 : index
    %24 = vector.load %arg9[%c0_19, %c0_20] : memref<8x384xf32, #tpu.memory_space<vmem>>, vector<8x384xf32>
    %cst_21 = arith.constant 0.000000e+00 : f32
    %25 = vector.broadcast %cst_21 : f32 to vector<8x384xf32>
    %c19_i32 = arith.constant 19 : i32
    %26 = tpu.dynamic_rotate %24 by %c19_i32 dim 1 : vector<8x384xf32>, i32 -> vector<8x384xf32>
    %c0_22 = arith.constant 0 : index
    %c0_23 = arith.constant 0 : index
    %c0_24 = arith.constant 0 : index
    %27 = vector.load %arg4[%c0_22, %c0_23, %c0_24] : memref<9x8x8xbf16, #tpu.memory_space<vmem>>, vector<1x8x8xbf16>
    %28 = vector.shape_cast %27 : vector<1x8x8xbf16> to vector<8x8xbf16>
    %29 = arith.truncf %26 : vector<8x384xf32> to vector<8x384xbf16>
    %cst_25 = arith.constant dense<0.000000e+00> : vector<8x384xf32>
    %30 = tpu.matmul %28, %29, %cst_25 {dimension_numbers = #tpu.dot_dimension_numbers<[1], [0], [0], [1], [0, 0, 1, 1], [], []>} : vector<8x8xbf16>, vector<8x384xbf16>, vector<8x384xf32> -> vector<8x384xf32>
    %31 = arith.addf %25, %30 : vector<8x384xf32>
    %c18_i32 = arith.constant 18 : i32
    %32 = tpu.dynamic_rotate %24 by %c18_i32 dim 1 : vector<8x384xf32>, i32 -> vector<8x384xf32>
    %c1 = arith.constant 1 : index
    %c0_26 = arith.constant 0 : index
    %c0_27 = arith.constant 0 : index
    %33 = vector.load %arg4[%c1, %c0_26, %c0_27] : memref<9x8x8xbf16, #tpu.memory_space<vmem>>, vector<1x8x8xbf16>
    %34 = vector.shape_cast %33 : vector<1x8x8xbf16> to vector<8x8xbf16>
    %35 = arith.truncf %32 : vector<8x384xf32> to vector<8x384xbf16>
    %cst_28 = arith.constant dense<0.000000e+00> : vector<8x384xf32>
    %36 = tpu.matmul %34, %35, %cst_28 {dimension_numbers = #tpu.dot_dimension_numbers<[1], [0], [0], [1], [0, 0, 1, 1], [], []>} : vector<8x8xbf16>, vector<8x384xbf16>, vector<8x384xf32> -> vector<8x384xf32>
    %37 = arith.addf %31, %36 : vector<8x384xf32>
    %c17_i32 = arith.constant 17 : i32
    %38 = tpu.dynamic_rotate %24 by %c17_i32 dim 1 : vector<8x384xf32>, i32 -> vector<8x384xf32>
    %c2 = arith.constant 2 : index
    %c0_29 = arith.constant 0 : index
    %c0_30 = arith.constant 0 : index
    %39 = vector.load %arg4[%c2, %c0_29, %c0_30] : memref<9x8x8xbf16, #tpu.memory_space<vmem>>, vector<1x8x8xbf16>
    %40 = vector.shape_cast %39 : vector<1x8x8xbf16> to vector<8x8xbf16>
    %41 = arith.truncf %38 : vector<8x384xf32> to vector<8x384xbf16>
    %cst_31 = arith.constant dense<0.000000e+00> : vector<8x384xf32>
    %42 = tpu.matmul %40, %41, %cst_31 {dimension_numbers = #tpu.dot_dimension_numbers<[1], [0], [0], [1], [0, 0, 1, 1], [], []>} : vector<8x8xbf16>, vector<8x384xbf16>, vector<8x384xf32> -> vector<8x384xf32>
    %43 = arith.addf %37, %42 : vector<8x384xf32>
    %c1_i32 = arith.constant 1 : i32
    %44 = tpu.dynamic_rotate %24 by %c1_i32 dim 1 : vector<8x384xf32>, i32 -> vector<8x384xf32>
    %c3 = arith.constant 3 : index
    %c0_32 = arith.constant 0 : index
    %c0_33 = arith.constant 0 : index
    %45 = vector.load %arg4[%c3, %c0_32, %c0_33] : memref<9x8x8xbf16, #tpu.memory_space<vmem>>, vector<1x8x8xbf16>
    %46 = vector.shape_cast %45 : vector<1x8x8xbf16> to vector<8x8xbf16>
    %47 = arith.truncf %44 : vector<8x384xf32> to vector<8x384xbf16>
    %cst_34 = arith.constant dense<0.000000e+00> : vector<8x384xf32>
    %48 = tpu.matmul %46, %47, %cst_34 {dimension_numbers = #tpu.dot_dimension_numbers<[1], [0], [0], [1], [0, 0, 1, 1], [], []>} : vector<8x8xbf16>, vector<8x384xbf16>, vector<8x384xf32> -> vector<8x384xf32>
    %49 = arith.addf %43, %48 : vector<8x384xf32>
    %c4 = arith.constant 4 : index
    %c0_35 = arith.constant 0 : index
    %c0_36 = arith.constant 0 : index
    %50 = vector.load %arg4[%c4, %c0_35, %c0_36] : memref<9x8x8xbf16, #tpu.memory_space<vmem>>, vector<1x8x8xbf16>
    %51 = vector.shape_cast %50 : vector<1x8x8xbf16> to vector<8x8xbf16>
    %52 = arith.truncf %24 : vector<8x384xf32> to vector<8x384xbf16>
    %cst_37 = arith.constant dense<0.000000e+00> : vector<8x384xf32>
    %53 = tpu.matmul %51, %52, %cst_37 {dimension_numbers = #tpu.dot_dimension_numbers<[1], [0], [0], [1], [0, 0, 1, 1], [], []>} : vector<8x8xbf16>, vector<8x384xbf16>, vector<8x384xf32> -> vector<8x384xf32>
    %54 = arith.addf %49, %53 : vector<8x384xf32>
    %c383_i32 = arith.constant 383 : i32
    %55 = tpu.dynamic_rotate %24 by %c383_i32 dim 1 : vector<8x384xf32>, i32 -> vector<8x384xf32>
    %c5 = arith.constant 5 : index
    %c0_38 = arith.constant 0 : index
    %c0_39 = arith.constant 0 : index
    %56 = vector.load %arg4[%c5, %c0_38, %c0_39] : memref<9x8x8xbf16, #tpu.memory_space<vmem>>, vector<1x8x8xbf16>
    %57 = vector.shape_cast %56 : vector<1x8x8xbf16> to vector<8x8xbf16>
    %58 = arith.truncf %55 : vector<8x384xf32> to vector<8x384xbf16>
    %cst_40 = arith.constant dense<0.000000e+00> : vector<8x384xf32>
    %59 = tpu.matmul %57, %58, %cst_40 {dimension_numbers = #tpu.dot_dimension_numbers<[1], [0], [0], [1], [0, 0, 1, 1], [], []>} : vector<8x8xbf16>, vector<8x384xbf16>, vector<8x384xf32> -> vector<8x384xf32>
    %60 = arith.addf %54, %59 : vector<8x384xf32>
    %c367_i32 = arith.constant 367 : i32
    %61 = tpu.dynamic_rotate %24 by %c367_i32 dim 1 : vector<8x384xf32>, i32 -> vector<8x384xf32>
    %c6 = arith.constant 6 : index
    %c0_41 = arith.constant 0 : index
    %c0_42 = arith.constant 0 : index
    %62 = vector.load %arg4[%c6, %c0_41, %c0_42] : memref<9x8x8xbf16, #tpu.memory_space<vmem>>, vector<1x8x8xbf16>
    %63 = vector.shape_cast %62 : vector<1x8x8xbf16> to vector<8x8xbf16>
    %64 = arith.truncf %61 : vector<8x384xf32> to vector<8x384xbf16>
    %cst_43 = arith.constant dense<0.000000e+00> : vector<8x384xf32>
    %65 = tpu.matmul %63, %64, %cst_43 {dimension_numbers = #tpu.dot_dimension_numbers<[1], [0], [0], [1], [0, 0, 1, 1], [], []>} : vector<8x8xbf16>, vector<8x384xbf16>, vector<8x384xf32> -> vector<8x384xf32>
    %66 = arith.addf %60, %65 : vector<8x384xf32>
    %c366_i32 = arith.constant 366 : i32
    %67 = tpu.dynamic_rotate %24 by %c366_i32 dim 1 : vector<8x384xf32>, i32 -> vector<8x384xf32>
    %c7 = arith.constant 7 : index
    %c0_44 = arith.constant 0 : index
    %c0_45 = arith.constant 0 : index
    %68 = vector.load %arg4[%c7, %c0_44, %c0_45] : memref<9x8x8xbf16, #tpu.memory_space<vmem>>, vector<1x8x8xbf16>
    %69 = vector.shape_cast %68 : vector<1x8x8xbf16> to vector<8x8xbf16>
    %70 = arith.truncf %67 : vector<8x384xf32> to vector<8x384xbf16>
    %cst_46 = arith.constant dense<0.000000e+00> : vector<8x384xf32>
    %71 = tpu.matmul %69, %70, %cst_46 {dimension_numbers = #tpu.dot_dimension_numbers<[1], [0], [0], [1], [0, 0, 1, 1], [], []>} : vector<8x8xbf16>, vector<8x384xbf16>, vector<8x384xf32> -> vector<8x384xf32>
    %72 = arith.addf %66, %71 : vector<8x384xf32>
    %c365_i32 = arith.constant 365 : i32
    %73 = tpu.dynamic_rotate %24 by %c365_i32 dim 1 : vector<8x384xf32>, i32 -> vector<8x384xf32>
    %c8 = arith.constant 8 : index
    %c0_47 = arith.constant 0 : index
    %c0_48 = arith.constant 0 : index
    %74 = vector.load %arg4[%c8, %c0_47, %c0_48] : memref<9x8x8xbf16, #tpu.memory_space<vmem>>, vector<1x8x8xbf16>
    %75 = vector.shape_cast %74 : vector<1x8x8xbf16> to vector<8x8xbf16>
    %76 = arith.truncf %73 : vector<8x384xf32> to vector<8x384xbf16>
    %cst_49 = arith.constant dense<0.000000e+00> : vector<8x384xf32>
    %77 = tpu.matmul %75, %76, %cst_49 {dimension_numbers = #tpu.dot_dimension_numbers<[1], [0], [0], [1], [0, 0, 1, 1], [], []>} : vector<8x8xbf16>, vector<8x384xbf16>, vector<8x384xf32> -> vector<8x384xf32>
    %78 = arith.addf %72, %77 : vector<8x384xf32>
    %79 = vector.extract_strided_slice %78 {offsets = [0, 0], sizes = [4, 384], strides = [1, 1]} : vector<8x384xf32> to vector<4x384xf32>
    %c0_50 = arith.constant 0 : index
    %c0_51 = arith.constant 0 : index
    %c0_52 = arith.constant 0 : index
    %c0_53 = arith.constant 0 : index
    %80 = vector.load %arg2[%c0_50, %c0_51, %c0_52, %c0_53] : memref<1x1x4x384xf32, #tpu.memory_space<vmem>>, vector<1x1x4x384xf32>
    %81 = vector.shape_cast %80 : vector<1x1x4x384xf32> to vector<4x384xf32>
    %82 = arith.addf %79, %81 : vector<4x384xf32>
    %c0_54 = arith.constant 0 : index
    %c0_55 = arith.constant 0 : index
    %c0_56 = arith.constant 0 : index
    %c0_57 = arith.constant 0 : index
    %83 = vector.load %arg8[%c0_54, %c0_55, %c0_56, %c0_57] : memref<1x1x4x384xf32, #tpu.memory_space<vmem>>, vector<1x1x4x384xf32>
    %84 = vector.shape_cast %83 : vector<1x1x4x384xf32> to vector<4x384xf32>
    %85 = vector.shape_cast %82 : vector<4x384xf32> to vector<1x1x4x384xf32>
    tpu.vector_store %arg8[%c0_54, %c0_55, %c0_56, %c0_57], %85 {strides = array<i32>} : memref<1x1x4x384xf32, #tpu.memory_space<vmem>>, vector<1x1x4x384xf32>,
    return
  }
  func.func @transform_0(%arg0: i32) -> (i32, i32, i32) {
    %c0_i32 = arith.constant 0 : i32
    %c0_i32_0 = arith.constant 0 : i32
    %c0_i32_1 = arith.constant 0 : i32
    return %arg0, %c0_i32, %c0_i32_0 : i32, i32, i32
  }
  func.func @transform_1(%arg0: i32) -> (i32, i32, i32, i32) {
    %c0_i32 = arith.constant 0 : i32
    %c0_i32_0 = arith.constant 0 : i32
    %c0_i32_1 = arith.constant 0 : i32
    %c0_i32_2 = arith.constant 0 : i32
    return %arg0, %c0_i32, %c0_i32_0, %c0_i32_1 : i32, i32, i32, i32
  }
  func.func @transform_2(%arg0: i32) -> (i32, i32) {
    %c0_i32 = arith.constant 0 : i32
    %c0_i32_0 = arith.constant 0 : i32
    %c0_i32_1 = arith.constant 0 : i32
    return %c0_i32, %c0_i32_0 : i32, i32
  }
  func.func @transform_3(%arg0: i32) -> (i32, i32, i32) {
    %c0_i32 = arith.constant 0 : i32
    %c0_i32_0 = arith.constant 0 : i32
    %c0_i32_1 = arith.constant 0 : i32
    %c0_i32_2 = arith.constant 0 : i32
    return %c0_i32, %c0_i32_0, %c0_i32_1 : i32, i32, i32
  }
  func.func @transform_4(%arg0: i32) -> (i32, i32, i32, i32) {
    %c0_i32 = arith.constant 0 : i32
    %c0_i32_0 = arith.constant 0 : i32
    %c0_i32_1 = arith.constant 0 : i32
    %c0_i32_2 = arith.constant 0 : i32
    return %arg0, %c0_i32, %c0_i32_0, %c0_i32_1 : i32, i32, i32, i32
  }
  func.func @transform_5(%arg0: i32) -> (i32, i32, i32, i32) {
    %c0_i32 = arith.constant 0 : i32
    %c0_i32_0 = arith.constant 0 : i32
    %c0_i32_1 = arith.constant 0 : i32
    %c0_i32_2 = arith.constant 0 : i32
    return %arg0, %c0_i32, %c0_i32_0, %c0_i32_1 : i32, i32, i32, i32
  }
  func.func @transform_6(%arg0: i32) -> (i32, i32) {
    %c0_i32 = arith.constant 0 : i32
    %c0_i32_0 = arith.constant 0 : i32
    %c0_i32_1 = arith.constant 0 : i32
    return %c0_i32, %c0_i32_0 : i32, i32
  }
  func.func @transform_7(%arg0: i32) -> (i32, i32, i32, i32) {
    %c0_i32 = arith.constant 0 : i32
    %c0_i32_0 = arith.constant 0 : i32
    %c0_i32_1 = arith.constant 0 : i32
    %c0_i32_2 = arith.constant 0 : i32
    return %arg0, %c0_i32, %c0_i32_0, %c0_i32_1 : i32, i32, i32, i32
  }
}

</mosaic_0001>

<llo_original>
// kernel: middle_block_2d_forward.1
$region0: #{middle_block_2d_forward.1}
  #allocation0 [shape = 'u32[]', space=smem, size = 0x4, offset = 0x4, fixed_abs, tag = 'smem constant byte address 0x4 - core index']
  #allocation1 [shape = 'u32[144,128]{1,0:T(1,128)}', space=vmem, size = 0x12000, scoped, tag = 'internal scratch']
  #allocation2 [shape = 'f32[8,384]{1,0:T(8,128)}', space=vmem, size = 0x3000, scoped, tag = 'scratch operand']
  %s0 = inlined_call_operand.vmem [shape: bf16[2,72,384], index: 0, kind: input, shape index: {}]
  %s1 = inlined_call_operand.vmem [shape: f32[2,1,4,384], index: 1, kind: input, shape index: {}]
  %s2 = inlined_call_operand.vmem [shape: bf16[8,72], index: 2, kind: input, shape index: {}]
  %s3 = inlined_call_operand.vmem [shape: bf16[9,8,8], index: 3, kind: input, shape index: {}]
  %s4 = inlined_call_operand.vmem [shape: f32[2,1,8,1], index: 4, kind: input, shape index: {}]
  %s5 = inlined_call_operand.vmem [shape: f32[2,1,8,1], index: 5, kind: input, shape index: {}]
  %s6 = inlined_call_operand.vmem [shape: f32[1,384], index: 6, kind: input, shape index: {}]
  %s7 = inlined_call_operand.vmem [shape: f32[2,1,4,384], index: 7, kind: output, shape index: {}]
  %s8 = sld [smem:[#allocation0]]
  $region61: #{middle_block_2d_forward.1} parent=0
    _
  %s10 = ssub.s32 1, %s8
  %s11 = scalar_select 0, %s10, %s8
  loop: start=0, step=1, limit=4
  $region2: #{middle_block_2d_forward.1} parent=0 // loop_pre_header
    _
  $region3: #{middle_block_2d_forward.1} parent=0 // loop_header
    %s13 = sphi 0, %s17
    %p14 = scmp.ge.s32.totalorder %s13, 4
    %s23 = sphi 0, %s25
    %s26 = sphi 0, %s23
    %s27 = sphi 0, %s26
    %s43 = sphi 0, %s27
    %s49 = sphi 0, %s51
    %s52 = sphi 0, %s49
    %s53 = sphi 0, %s52
    %s69 = sphi 0, %s53
    %s73 = sphi 0, %s73
    %s75 = sphi 0, %s73
    %s76 = sphi 0, %s75
    %s90 = sphi 0, %s76
    %s94 = sphi 0, %s94
    %s96 = sphi 0, %s94
    %s97 = sphi 0, %s96
    %s111 = sphi 0, %s97
    %s117 = sphi 0, %s119
    %s120 = sphi 0, %s117
    %s121 = sphi 0, %s120
    %s137 = sphi 0, %s121
    %s143 = sphi 0, %s145
    %s146 = sphi 0, %s143
    %s147 = sphi 0, %s146
    %s163 = sphi 0, %s147
    %s167 = sphi 0, %s167
    %s169 = sphi 0, %s167
    %s170 = sphi 0, %s169
    %s184 = sphi 0, %s170
    %s190 = sphi 0, %s192
    %s193 = sphi 0, %s190
    %s194 = sphi 0, %s193
    %s210 = sphi 0, %s194
  $region4: #{middle_block_2d_forward.1} parent=0 // loop_header_branch
    %16 = sbr.rel (%p14) target = $region8
  $region5: #{middle_block_2d_forward.1} parent=0 // loop_body
    %s18 = ssub.s32 %s13, 1
    %s19 = ssub.s32 %s13, 2
    %s20 = sadd.s32 %s13, 1
    %s21 = ssub.s32 %s13, %s20
    %p22 = scmp.eq.s32.totalorder %s21, 0
    %s24 = sadd.s32 %s23, 1
    %s25 = scalar_select %p22, %s23, %s24
    %p28 = pneg %p22
    %p29 = scmp.eq.s32.totalorder %s13, 1
    %p30 = por %p28, %p29
    %p31 = scmp.ne.s32.totalorder %s23, %s26
    %p32 = scmp.eq.s32.totalorder %s13, 0
    %p33 = por %p31, %p32
    %p34 = scmp.ne.s32.totalorder %s23, %s26
    %p35 = scmp.eq.s32.totalorder %s18, 1
    %p36 = por %p34, %p35
    %p37 = scmp.ne.s32.totalorder %s26, %s27
    %p38 = scmp.eq.s32.totalorder %s18, 0
    %p39 = por %p37, %p38
    %p40 = scmp.ne.s32.totalorder %s26, %s27
    %p41 = scmp.eq.s32.totalorder %s19, 1
    %p42 = por %p40, %p41
    %p44 = scmp.ne.s32.totalorder %s27, %s43
    %p45 = scmp.eq.s32.totalorder %s19, 0
    %p46 = por %p44, %p45
    %s47 = ssub.s32 %s13, %s20
    %p48 = scmp.eq.s32.totalorder %s47, 0
    %s50 = sadd.s32 %s49, 1
    %s51 = scalar_select %p48, %s49, %s50
    %p54 = pneg %p48
    %p55 = scmp.eq.s32.totalorder %s13, 1
    %p56 = por %p54, %p55
    %p57 = scmp.ne.s32.totalorder %s49, %s52
    %p58 = scmp.eq.s32.totalorder %s13, 0
    %p59 = por %p57, %p58
    %p60 = scmp.ne.s32.totalorder %s49, %s52
    %p61 = scmp.eq.s32.totalorder %s18, 1
    %p62 = por %p60, %p61
    %p63 = scmp.ne.s32.totalorder %s52, %s53
    %p64 = scmp.eq.s32.totalorder %s18, 0
    %p65 = por %p63, %p64
    %p66 = scmp.ne.s32.totalorder %s52, %s53
    %p67 = scmp.eq.s32.totalorder %s19, 1
    %p68 = por %p66, %p67
    %p70 = scmp.ne.s32.totalorder %s53, %s69
    %p71 = scmp.eq.s32.totalorder %s19, 0
    %p72 = por %p70, %p71
    %s74 = sadd.s32 %s73, 1
    %p77 = scmp.eq.s32.totalorder %s13, 1
    %p78 = scmp.ne.s32.totalorder %s73, %s75
    %p79 = scmp.eq.s32.totalorder %s13, 0
    %p80 = por %p78, %p79
    %p81 = scmp.ne.s32.totalorder %s73, %s75
    %p82 = scmp.eq.s32.totalorder %s18, 1
    %p83 = por %p81, %p82
    %p84 = scmp.ne.s32.totalorder %s75, %s76
    %p85 = scmp.eq.s32.totalorder %s18, 0
    %p86 = por %p84, %p85
    %p87 = scmp.ne.s32.totalorder %s75, %s76
    %p88 = scmp.eq.s32.totalorder %s19, 1
    %p89 = por %p87, %p88
    %p91 = scmp.ne.s32.totalorder %s76, %s90
    %p92 = scmp.eq.s32.totalorder %s19, 0
    %p93 = por %p91, %p92
    %s95 = sadd.s32 %s94, 1
    %p98 = scmp.eq.s32.totalorder %s13, 1
    %p99 = scmp.ne.s32.totalorder %s94, %s96
    %p100 = scmp.eq.s32.totalorder %s13, 0
    %p101 = por %p99, %p100
    %p102 = scmp.ne.s32.totalorder %s94, %s96
    %p103 = scmp.eq.s32.totalorder %s18, 1
    %p104 = por %p102, %p103
    %p105 = scmp.ne.s32.totalorder %s96, %s97
    %p106 = scmp.eq.s32.totalorder %s18, 0
    %p107 = por %p105, %p106
    %p108 = scmp.ne.s32.totalorder %s96, %s97
    %p109 = scmp.eq.s32.totalorder %s19, 1
    %p110 = por %p108, %p109
    %p112 = scmp.ne.s32.totalorder %s97, %s111
    %p113 = scmp.eq.s32.totalorder %s19, 0
    %p114 = por %p112, %p113
    %s115 = ssub.s32 %s13, %s20
    %p116 = scmp.eq.s32.totalorder %s115, 0
    %s118 = sadd.s32 %s117, 1
    %s119 = scalar_select %p116, %s117, %s118
    %p122 = pneg %p116
    %p123 = scmp.eq.s32.totalorder %s13, 1
    %p124 = por %p122, %p123
    %p125 = scmp.ne.s32.totalorder %s117, %s120
    %p126 = scmp.eq.s32.totalorder %s13, 0
    %p127 = por %p125, %p126
    %p128 = scmp.ne.s32.totalorder %s117, %s120
    %p129 = scmp.eq.s32.totalorder %s18, 1
    %p130 = por %p128, %p129
    %p131 = scmp.ne.s32.totalorder %s120, %s121
    %p132 = scmp.eq.s32.totalorder %s18, 0
    %p133 = por %p131, %p132
    %p134 = scmp.ne.s32.totalorder %s120, %s121
    %p135 = scmp.eq.s32.totalorder %s19, 1
    %p136 = por %p134, %p135
    %p138 = scmp.ne.s32.totalorder %s121, %s137
    %p139 = scmp.eq.s32.totalorder %s19, 0
    %p140 = por %p138, %p139
    %s141 = ssub.s32 %s13, %s20
    %p142 = scmp.eq.s32.totalorder %s141, 0
    %s144 = sadd.s32 %s143, 1
    %s145 = scalar_select %p142, %s143, %s144
    %p148 = pneg %p142
    %p149 = scmp.eq.s32.totalorder %s13, 1
    %p150 = por %p148, %p149
    %p151 = scmp.ne.s32.totalorder %s143, %s146
    %p152 = scmp.eq.s32.totalorder %s13, 0
    %p153 = por %p151, %p152
    %p154 = scmp.ne.s32.totalorder %s143, %s146
    %p155 = scmp.eq.s32.totalorder %s18, 1
    %p156 = por %p154, %p155
    %p157 = scmp.ne.s32.totalorder %s146, %s147
    %p158 = scmp.eq.s32.totalorder %s18, 0
    %p159 = por %p157, %p158
    %p160 = scmp.ne.s32.totalorder %s146, %s147
    %p161 = scmp.eq.s32.totalorder %s19, 1
    %p162 = por %p160, %p161
    %p164 = scmp.ne.s32.totalorder %s147, %s163
    %p165 = scmp.eq.s32.totalorder %s19, 0
    %p166 = por %p164, %p165
    %s168 = sadd.s32 %s167, 1
    %p171 = scmp.eq.s32.totalorder %s13, 1
    %p172 = scmp.ne.s32.totalorder %s167, %s169
    %p173 = scmp.eq.s32.totalorder %s13, 0
    %p174 = por %p172, %p173
    %p175 = scmp.ne.s32.totalorder %s167, %s169
    %p176 = scmp.eq.s32.totalorder %s18, 1
    %p177 = por %p175, %p176
    %p178 = scmp.ne.s32.totalorder %s169, %s170
    %p179 = scmp.eq.s32.totalorder %s18, 0
    %p180 = por %p178, %p179
    %p181 = scmp.ne.s32.totalorder %s169, %s170
    %p182 = scmp.eq.s32.totalorder %s19, 1
    %p183 = por %p181, %p182
    %p185 = scmp.ne.s32.totalorder %s170, %s184
    %p186 = scmp.eq.s32.totalorder %s19, 0
    %p187 = por %p185, %p186
    %s188 = ssub.s32 %s13, %s20
    %p189 = scmp.eq.s32.totalorder %s188, 0
    %s191 = sadd.s32 %s190, 1
    %s192 = scalar_select %p189, %s190, %s191
    %p195 = pneg %p189
    %p196 = scmp.eq.s32.totalorder %s13, 1
    %p197 = por %p195, %p196
    %p198 = scmp.ne.s32.totalorder %s190, %s193
    %p199 = scmp.eq.s32.totalorder %s13, 0
    %p200 = por %p198, %p199
    %p201 = scmp.ne.s32.totalorder %s190, %s193
    %p202 = scmp.eq.s32.totalorder %s18, 1
    %p203 = por %p201, %p202
    %p204 = scmp.ne.s32.totalorder %s193, %s194
    %p205 = scmp.eq.s32.totalorder %s18, 0
    %p206 = por %p204, %p205
    %p207 = scmp.ne.s32.totalorder %s193, %s194
    %p208 = scmp.eq.s32.totalorder %s19, 1
    %p209 = por %p207, %p208
    %p211 = scmp.ne.s32.totalorder %s194, %s210
    %p212 = scmp.eq.s32.totalorder %s19, 0
    %p213 = por %p211, %p212
    %p214 = scmp.le.s32.totalorder 1, %s13
    %p215 = scmp.lt.s32.totalorder %s13, 3
    %p216 = pnand %p214, %p215
    %p217 = pneg %p216
    // Predicated region
    $region9: #{middle_block_2d_forward.1} parent=5 // pred_check
      _
    $region10: #{middle_block_2d_forward.1} parent=5 // pred_check_branch
      %219 = sbr.rel (%p216) target = $region12
    $region11: #{middle_block_2d_forward.1} parent=5 // pred_region
      %s220 = ssub.s32 %s13, 1
      // Predicated region
      $region13: #{middle_block_2d_forward.1} parent=11 // pred_check
        %p221 = pneg %p86
      $region14: #{middle_block_2d_forward.1} parent=11 // pred_check_branch
        %223 = sbr.rel (%p221) target = $region16
      $region15: #{middle_block_2d_forward.1} parent=11 // pred_region
        _
      $region16: #{middle_block_2d_forward.1} parent=11 // pred_fallthru
        _
      // Predicated region
      $region17: #{middle_block_2d_forward.1} parent=11 // pred_check
        %p224 = pneg %p107
      $region18: #{middle_block_2d_forward.1} parent=11 // pred_check_branch
        %226 = sbr.rel (%p224) target = $region20
      $region19: #{middle_block_2d_forward.1} parent=11 // pred_region
        _
      $region20: #{middle_block_2d_forward.1} parent=11 // pred_fallthru
        _
      // Predicated region
      $region21: #{middle_block_2d_forward.1} parent=11 // pred_check
        %p227 = pneg %p180
      $region22: #{middle_block_2d_forward.1} parent=11 // pred_check_branch
        %229 = sbr.rel (%p227) target = $region24
      $region23: #{middle_block_2d_forward.1} parent=11 // pred_region
        _
      $region24: #{middle_block_2d_forward.1} parent=11 // pred_fallthru
        _
    $region12: #{middle_block_2d_forward.1} parent=5 // pred_fallthru
      _
    %p230 = scmp.lt.s32.totalorder %s13, 2
    // Predicated region
    $region25: #{middle_block_2d_forward.1} parent=5 // pred_check
      %p231 = pneg %p230
    $region26: #{middle_block_2d_forward.1} parent=5 // pred_check_branch
      %233 = sbr.rel (%p231) target = $region28
    $region27: #{middle_block_2d_forward.1} parent=5 // pred_region
      // Predicated region
      $region29: #{middle_block_2d_forward.1} parent=27 // pred_check
        %p234 = pneg %p33
      $region30: #{middle_block_2d_forward.1} parent=27 // pred_check_branch
        %236 = sbr.rel (%p234) target = $region32
      $region31: #{middle_block_2d_forward.1} parent=27 // pred_region
        %p237 = scmp.lt.s32.totalorder %s13, 1
        %s238 = scalar_select %p237, %s13, 1
        %s239 = smul.addr %s238, 27
        %s240 = smul.addr %s239, 4
        %s241 = scalar_lea.vmem %s0, %s240
      $region32: #{middle_block_2d_forward.1} parent=27 // pred_fallthru
        _
      // Predicated region
      $region33: #{middle_block_2d_forward.1} parent=27 // pred_check
        %p242 = pneg %p59
      $region34: #{middle_block_2d_forward.1} parent=27 // pred_check_branch
        %244 = sbr.rel (%p242) target = $region36
      $region35: #{middle_block_2d_forward.1} parent=27 // pred_region
        %p245 = scmp.lt.s32.totalorder %s13, 1
        %s246 = scalar_select %p245, %s13, 1
        %s247 = smul.addr %s246, 3
        %s248 = smul.addr %s247, 4
        %s249 = scalar_lea.vmem %s1, %s248
      $region36: #{middle_block_2d_forward.1} parent=27 // pred_fallthru
        _
      // Predicated region
      $region37: #{middle_block_2d_forward.1} parent=27 // pred_check
        %p250 = pneg %p127
      $region38: #{middle_block_2d_forward.1} parent=27 // pred_check_branch
        %252 = sbr.rel (%p250) target = $region40
      $region39: #{middle_block_2d_forward.1} parent=27 // pred_region
        %p253 = scmp.lt.s32.totalorder %s13, 1
        %s254 = scalar_select %p253, %s13, 1
        %s255 = smul.addr %s254, 8
        %s256 = scalar_lea.vmem %s4, %s255
      $region40: #{middle_block_2d_forward.1} parent=27 // pred_fallthru
        _
      // Predicated region
      $region41: #{middle_block_2d_forward.1} parent=27 // pred_check
        %p257 = pneg %p153
      $region42: #{middle_block_2d_forward.1} parent=27 // pred_check_branch
        %259 = sbr.rel (%p257) target = $region44
      $region43: #{middle_block_2d_forward.1} parent=27 // pred_region
        %p260 = scmp.lt.s32.totalorder %s13, 1
        %s261 = scalar_select %p260, %s13, 1
        %s262 = smul.addr %s261, 8
        %s263 = scalar_lea.vmem %s5, %s262
      $region44: #{middle_block_2d_forward.1} parent=27 // pred_fallthru
        _
    $region28: #{middle_block_2d_forward.1} parent=5 // pred_fallthru
      _
    %p264 = scmp.le.s32.totalorder 1, %s13
    %p265 = scmp.lt.s32.totalorder %s13, 3
    %p266 = pnand %p264, %p265
    %p267 = pneg %p266
    // Predicated region
    $region45: #{middle_block_2d_forward.1} parent=5 // pred_check
      _
    $region46: #{middle_block_2d_forward.1} parent=5 // pred_check_branch
      %269 = sbr.rel (%p266) target = $region48
    $region47: #{middle_block_2d_forward.1} parent=5 // pred_region
      %s270 = ssub.s32 %s13, 1
      %p271 = scmp.lt.s32.totalorder %s18, 1
      %s272 = scalar_select %p271, %s18, 1
      %s273 = smul.addr %s272, 27
      %s274 = smul.addr %s273, 4
      %s275 = scalar_lea.vmem %s0, %s274
      %p276 = pneg %p39
      %p277 = pneg %p36
      %p278 = scmp.lt.s32.totalorder %s18, 1
      %s279 = scalar_select %p278, %s18, 1
      %s280 = smul.addr %s279, 3
      %s281 = smul.addr %s280, 4
      %s282 = scalar_lea.vmem %s1, %s281
      %p283 = pneg %p65
      %p284 = pneg %p62
      %p285 = pneg %p86
      %p286 = pneg %p83
      %p287 = pneg %p107
      %p288 = pneg %p104
      %p289 = scmp.lt.s32.totalorder %s18, 1
      %s290 = scalar_select %p289, %s18, 1
      %s291 = smul.addr %s290, 8
      %s292 = scalar_lea.vmem %s4, %s291
      %p293 = pneg %p133
      %p294 = pneg %p130
      %p295 = scmp.lt.s32.totalorder %s18, 1
      %s296 = scalar_select %p295, %s18, 1
      %s297 = smul.addr %s296, 8
      %s298 = scalar_lea.vmem %s5, %s297
      %p299 = pneg %p159
      %p300 = pneg %p156
      %p301 = pneg %p180
      %p302 = pneg %p177
      %p303 = pneg %p206
      %p304 = pneg %p203
      %p305 = scmp.lt.s32.totalorder %s18, 1
      %s306 = scalar_select %p305, %s18, 1
      %s307 = smul.addr %s306, 3
      %s308 = smul.addr %s307, 4
      %s309 = scalar_lea.vmem %s7, %s308
      %p310 = scmp.lt.s32.totalorder %s18, 1
      %s311 = scalar_select %p310, %s18, 1
      %s312 = smul.addr %s311, 27
      %s313 = smul.addr %s312, 4
      %s314 = scalar_lea.vmem %s0, %s313
      %p315 = scmp.lt.s32.totalorder %s18, 1
      %s316 = scalar_select %p315, %s18, 1
      %s317 = smul.addr %s316, 3
      %s318 = smul.addr %s317, 4
      %s319 = scalar_lea.vmem %s1, %s318
      %p320 = scmp.lt.s32.totalorder %s18, 1
      %s321 = scalar_select %p320, %s18, 1
      %s322 = smul.addr %s321, 8
      %s323 = scalar_lea.vmem %s4, %s322
      %p324 = scmp.lt.s32.totalorder %s18, 1
      %s325 = scalar_select %p324, %s18, 1
      %s326 = smul.addr %s325, 8
      %s327 = scalar_lea.vmem %s5, %s326
      %p328 = scmp.lt.s32.totalorder %s18, 1
      %s329 = scalar_select %p328, %s18, 1
      %s330 = smul.addr %s329, 3
      %s331 = smul.addr %s330, 4
      %s332 = scalar_lea.vmem %s7, %s331
      %v334 = vld [vmem:[%s2] sm:$0xf]
      %v335 = vld [vmem:[%s314] sm:$0xff]
      %v336 = vld [vmem:[%s314 + $0x8] sm:$0xf]
      %v337 = vld [vmem:[%s314 + $0xc] sm:$0xff]
      %v338 = vld [vmem:[%s314 + $0x14] sm:$0xf]
      %v339 = vld [vmem:[%s314 + $0x18] sm:$0xff]
      %v340 = vld [vmem:[%s314 + $0x20] sm:$0xf]
      %v341 = vld [vmem:[%s314 + $0x24] sm:$0xff]
      %v342 = vld [vmem:[%s314 + $0x2c] sm:$0xf]
      %v343 = vld [vmem:[%s314 + $0x30] sm:$0xff]
      %v344 = vld [vmem:[%s314 + $0x38] sm:$0xf]
      %v345 = vld [vmem:[%s314 + $0x3c] sm:$0xff]
      %v346 = vld [vmem:[%s314 + $0x44] sm:$0xf]
      %v347 = vld [vmem:[%s314 + $0x48] sm:$0xff]
      %v348 = vld [vmem:[%s314 + $0x50] sm:$0xf]
      %v349 = vld [vmem:[%s314 + $0x54] sm:$0xff]
      %v350 = vld [vmem:[%s314 + $0x5c] sm:$0xf]
      %v351 = vld [vmem:[%s314 + $0x60] sm:$0xff]
      %v352 = vld [vmem:[%s314 + $0x68] sm:$0xf]
      %v371 = vunpack.c.l.b16 %v335
      %v372 = vunpack.c.h.b16 %v335
      %v373 = vunpack.c.l.b16 %v336
      %v374 = vunpack.c.l.b16 %v337
      %v375 = vunpack.c.h.b16 %v337
      %v376 = vunpack.c.l.b16 %v338
      %v377 = vunpack.c.l.b16 %v339
      %v378 = vunpack.c.h.b16 %v339
      %v379 = vunpack.c.l.b16 %v340
      %v380 = vunpack.c.l.b16 %v341
      %v381 = vunpack.c.h.b16 %v341
      %v382 = vunpack.c.l.b16 %v342
      %v383 = vunpack.c.l.b16 %v343
      %v384 = vunpack.c.h.b16 %v343
      %v385 = vunpack.c.l.b16 %v344
      %v386 = vunpack.c.l.b16 %v345
      %v387 = vunpack.c.h.b16 %v345
      %v388 = vunpack.c.l.b16 %v346
      %v389 = vunpack.c.l.b16 %v347
      %v390 = vunpack.c.h.b16 %v347
      %v391 = vunpack.c.l.b16 %v348
      %v392 = vunpack.c.l.b16 %v349
      %v393 = vunpack.c.h.b16 %v349
      %v394 = vunpack.c.l.b16 %v350
      %v395 = vunpack.c.l.b16 %v351
      %v396 = vunpack.c.h.b16 %v351
      %v397 = vunpack.c.l.b16 %v352
      %v398 = vpack.c.b16 %v374, %v371
      %v399 = vpack.c.b16 %v375, %v372
      %v400 = vpack.c.b16 %v376, %v373
      %v401 = vpack.c.b16 %v380, %v377
      %v402 = vpack.c.b16 %v381, %v378
      %v403 = vpack.c.b16 %v382, %v379
      %v404 = vpack.c.b16 %v386, %v383
      %v405 = vpack.c.b16 %v387, %v384
      %v406 = vpack.c.b16 %v388, %v385
      %v407 = vpack.c.b16 %v392, %v389
      %v408 = vpack.c.b16 %v393, %v390
      %v409 = vpack.c.b16 %v394, %v391
      %v410 = vpack.c.b16 %v395, %v395
      %v411 = vpack.c.b16 %v396, %v396
      %v412 = vpack.c.b16 %v397, %v397
      %vm425 = vcmask 588800
      %v427 = vsel %vm425, %v334, 0
      %vm429 = vcmask 1043456
      %v431 = vsel %vm429, %v410, 0
      %v434 = vsel %vm429, %v411, 0
      %v437 = vsel %vm429, %v412, 0
      %439 = vmatprep.subr.bf16.mxu0 %v399
      %440 = vmatpush1.bf16.msra.mxu0 %v398
      %441 = vmatprep.subr.bf16.mxu0 %v402
      %442 = vmatpush1.bf16.msra.mxu0 %v401
      %443 = vmatprep.subr.bf16.mxu0 %v405
      %444 = vmatpush1.bf16.msra.mxu0 %v404
      %445 = vmatprep.subr.bf16.mxu0 %v408
      %446 = vmatpush1.bf16.msra.mxu0 %v407
      %447 = vmatprep.subr.bf16.mxu0 %v434
      %448 = vmatpush1.bf16.msra.mxu0 %v431
      %449 = vmatprep.subr.bf16.mxu0 0
      %450 = vmatpush1.bf16.msra.mxu0 0
      %451 = vmatprep.subr.bf16.mxu0 0
      %452 = vmatpush1.bf16.msra.mxu0 0
      %453 = vmatprep.subr.bf16.mxu0 0
      %454 = vmatpush1.bf16.msra.mxu0 0
      %455 = vmatprep.subr.bf16.mxu0 0
      %456 = vmatpush1.bf16.msra.mxu0 0
      %457 = vmatprep.subr.bf16.mxu0 0
      %458 = vmatpush1.bf16.msra.mxu0 0
      %459 = vmatprep.subr.bf16.mxu0 0
      %460 = vmatpush1.bf16.msra.mxu0 0
      %461 = vmatprep.subr.bf16.mxu0 0
      %462 = vmatpush1.bf16.msra.mxu0 0
      %463 = vmatprep.subr.bf16.mxu0 0
      %464 = vmatpush1.bf16.msra.mxu0 0
      %465 = vmatprep.subr.bf16.mxu0 0
      %466 = vmatpush1.bf16.msra.mxu0 0
      %467 = vmatprep.subr.bf16.mxu0 0
      %468 = vmatpush1.bf16.msra.mxu0 0
      %469 = vmatprep.subr.bf16.mxu0 0
      %470 = vmatpush1.bf16.msra.mxu0 0
      %471 = vmatprep.mubr.bf16.mxu0 0
      %472 = vmatmul.mubr.bf16.gmra.mrb[0].mxu0 %v427
      %v473 = vpop.f32.mrb[0].mxu0
      %v474 = vadd.f32 0.0, %v473
      %v475 = vpop.f32.mrb[0].mxu0
      %v476 = vadd.f32 0.0, %v475
      %v477 = vpop.f32.mrb[0].mxu0
      %v478 = vpop.f32.mrb[0].mxu0
      %479 = vdwg.mxu0
      %480 = vmatprep.subr.bf16.mxu0 0
      %481 = vmatpush1.bf16.msra.mxu0 %v400
      %482 = vmatprep.subr.bf16.mxu0 0
      %483 = vmatpush1.bf16.msra.mxu0 %v403
      %484 = vmatprep.subr.bf16.mxu0 0
      %485 = vmatpush1.bf16.msra.mxu0 %v406
      %486 = vmatprep.subr.bf16.mxu0 0
      %487 = vmatpush1.bf16.msra.mxu0 %v409
      %488 = vmatprep.subr.bf16.mxu0 0
      %489 = vmatpush1.bf16.msra.mxu0 %v437
      %490 = vmatprep.subr.bf16.mxu0 0
      %491 = vmatpush1.bf16.msra.mxu0 0
      %492 = vmatprep.subr.bf16.mxu0 0
      %493 = vmatpush1.bf16.msra.mxu0 0
      %494 = vmatprep.subr.bf16.mxu0 0
      %495 = vmatpush1.bf16.msra.mxu0 0
      %496 = vmatprep.subr.bf16.mxu0 0
      %497 = vmatpush1.bf16.msra.mxu0 0
      %498 = vmatprep.subr.bf16.mxu0 0
      %499 = vmatpush1.bf16.msra.mxu0 0
      %500 = vmatprep.subr.bf16.mxu0 0
      %501 = vmatpush1.bf16.msra.mxu0 0
      %502 = vmatprep.subr.bf16.mxu0 0
      %503 = vmatpush1.bf16.msra.mxu0 0
      %504 = vmatprep.subr.bf16.mxu0 0
      %505 = vmatpush1.bf16.msra.mxu0 0
      %506 = vmatprep.subr.bf16.mxu0 0
      %507 = vmatpush1.bf16.msra.mxu0 0
      %508 = vmatprep.subr.bf16.mxu0 0
      %509 = vmatpush1.bf16.msra.mxu0 0
      %510 = vmatprep.subr.bf16.mxu0 0
      %511 = vmatpush1.bf16.msra.mxu0 0
      %512 = vmatprep.mubr.bf16.mxu0 0
      %513 = vmatmul.mubr.bf16.gmra.mrb[0].mxu0 %v427
      %v514 = vpop.f32.mrb[0].mxu0
      %v515 = vadd.f32 0.0, %v514
      %v516 = vpop.f32.mrb[0].mxu0
      %v517 = vpop.f32.mrb[0].mxu0
      %v518 = vpop.f32.mrb[0].mxu0
      %519 = vdwg.mxu0
      %v520 = vld [vmem:[%s6] sm:$0x7]
      %v521 = vld [vmem:[%s323] sm:$0xff]
      %523 = vset.pattern.permute.xlu0 0
      %524 = vperm.xlu0 %523, %v521
      %v525 = vpop.permute.xlu0 %524
      %v527 = vmul.f32 %v474, %v525
      %v528 = vmul.f32 %v476, %v525
      %v529 = vmul.f32 %v515, %v525
      %v530 = vld [vmem:[%s327] sm:$0xff]
      %532 = vset.pattern.permute.xlu0 0
      %533 = vperm.xlu0 %532, %v530
      %v534 = vpop.permute.xlu0 %533
      %v536 = vadd.f32 %v527, %v534
      %v537 = vadd.f32 %v528, %v534
      %v538 = vadd.f32 %v529, %v534
      %v539 = vsub.f32 0.0, %v536
      %v540 = vsub.f32 0.0, %v537
      %v541 = vsub.f32 0.0, %v538
      %v542 = vmul.f32 %v539, 1.442695
      %v543 = vpow.pop %v542
      %v544 = vmul.f32 %v540, 1.442695
      %v545 = vpow.pop %v544
      %v546 = vmul.f32 %v541, 1.442695
      %v547 = vpow.pop %v546
      %v548 = vadd.f32 %v543, 1.0
      %v549 = vadd.f32 %v545, 1.0
      %v550 = vadd.f32 %v547, 1.0
      %v551 = vrcp.pop %v548
      %v552 = vmul.f32 1.0, %v551
      %v553 = vrcp.pop %v549
      %v554 = vmul.f32 1.0, %v553
      %v555 = vrcp.pop %v550
      %v556 = vmul.f32 1.0, %v555
      %v557 = vmul.f32 %v536, %v552
      %v558 = vmul.f32 %v537, %v554
      %v559 = vmul.f32 %v538, %v556
      %v561 = vlaneseq
      %v562 = vshrl.u32 %v561, 7
      %v563 = vsub.s32 0, %v562
      %v564 = vrot.slane %v520, %v563
      %v565 = vlaneseq
      %v566 = vshrl.u32 %v565, 7
      %v567 = vsub.s32 1, %v566
      %v568 = vrot.slane %v520, %v567
      %v569 = vlaneseq
      %v570 = vshrl.u32 %v569, 7
      %v571 = vsub.s32 2, %v570
      %v572 = vrot.slane %v520, %v571
      %v576 = vmul.f32 %v557, %v564
      %v577 = vmul.f32 %v558, %v568
      %v578 = vmul.f32 %v559, %v572
      %579 = vst [vmem:[#allocation2] sm:$0xff] %v576
      %580 = vst [vmem:[#allocation2 + $0x8] sm:$0xff] %v577
      %581 = vst [vmem:[#allocation2 + $0x10] sm:$0xff] %v578
      %v582 = vld [vmem:[#allocation2] sm:$0xff]
      %v583 = vld [vmem:[#allocation2 + $0x8] sm:$0xff]
      %v584 = vld [vmem:[#allocation2 + $0x10] sm:$0xff]
      %585 = vrot.lane.b32.xlu0 %v582, 19
      %v586 = vpop.permute.xlu0 %585
      %587 = vrot.lane.b32.xlu0 %v583, 19
      %v588 = vpop.permute.xlu0 %587
      %589 = vrot.lane.b32.xlu0 %v584, 19
      %v590 = vpop.permute.xlu0 %589
      %v591 = vlaneseq
      %v592 = vand.u32 %v591, 127
      %vm593 = vcmp.lt.s32.totalorder %v592, 19
      %v594 = vsel %vm593, %v588, %v590
      %v595 = vsel %vm593, %v586, %v588
      %v596 = vsel %vm593, %v590, %v586
      %v597 = vld [vmem:[%s3] sm:$0xf]
      %v598 = vpack.c.bf16 %v596, %v596
      %v599 = vpack.c.bf16 %v595, %v595
      %v600 = vpack.c.bf16 %v594, %v594
      %601 = vrot.lane.b32.xlu0 %v582, 18
      %v602 = vpop.permute.xlu0 %601
      %603 = vrot.lane.b32.xlu0 %v583, 18
      %v604 = vpop.permute.xlu0 %603
      %605 = vrot.lane.b32.xlu0 %v584, 18
      %v606 = vpop.permute.xlu0 %605
      %vm607 = vcmp.lt.s32.totalorder %v592, 18
      %v608 = vsel %vm607, %v604, %v606
      %v609 = vsel %vm607, %v602, %v604
      %v610 = vsel %vm607, %v606, %v602
      %s611 = scalar_lea.vmem %s3, 4
      %v612 = vld [vmem:[%s611] sm:$0xf]
      %v613 = vpack.c.bf16 %v610, %v610
      %v614 = vpack.c.bf16 %v609, %v609
      %v615 = vpack.c.bf16 %v608, %v608
      %vm616 = vcmask 64512
      %v618 = vsel %vm616, %v612, 0
      %v621 = vsel %vm429, %v613, 0
      %v624 = vsel %vm429, %v614, 0
      %v627 = vsel %vm429, %v615, 0
      %629 = vmatprep.subr.bf16.mxu0 %v624
      %630 = vmatpush1.bf16.msra.mxu0 %v621
      %631 = vmatprep.subr.bf16.mxu0 0
      %632 = vmatpush1.bf16.msra.mxu0 0
      %633 = vmatprep.subr.bf16.mxu0 0
      %634 = vmatpush1.bf16.msra.mxu0 0
      %635 = vmatprep.subr.bf16.mxu0 0
      %636 = vmatpush1.bf16.msra.mxu0 0
      %637 = vmatprep.subr.bf16.mxu0 0
      %638 = vmatpush1.bf16.msra.mxu0 0
      %639 = vmatprep.subr.bf16.mxu0 0
      %640 = vmatpush1.bf16.msra.mxu0 0
      %641 = vmatprep.subr.bf16.mxu0 0
      %642 = vmatpush1.bf16.msra.mxu0 0
      %643 = vmatprep.subr.bf16.mxu0 0
      %644 = vmatpush1.bf16.msra.mxu0 0
      %645 = vmatprep.subr.bf16.mxu0 0
      %646 = vmatpush1.bf16.msra.mxu0 0
      %647 = vmatprep.subr.bf16.mxu0 0
      %648 = vmatpush1.bf16.msra.mxu0 0
      %649 = vmatprep.subr.bf16.mxu0 0
      %650 = vmatpush1.bf16.msra.mxu0 0
      %651 = vmatprep.subr.bf16.mxu0 0
      %652 = vmatpush1.bf16.msra.mxu0 0
      %653 = vmatprep.subr.bf16.mxu0 0
      %654 = vmatpush1.bf16.msra.mxu0 0
      %655 = vmatprep.subr.bf16.mxu0 0
      %656 = vmatpush1.bf16.msra.mxu0 0
      %657 = vmatprep.subr.bf16.mxu0 0
      %658 = vmatpush1.bf16.msra.mxu0 0
      %659 = vmatprep.subr.bf16.mxu0 0
      %660 = vmatpush1.bf16.msra.mxu0 0
      %661 = vmatprep.mubr.bf16.mxu0 0
      %662 = vmatmul.mubr.bf16.gmra.mrb[0].mxu0 %v618
      %v663 = vpop.f32.mrb[0].mxu0
      %v664 = vadd.f32 0.0, %v663
      %v665 = vpop.f32.mrb[0].mxu0
      %v666 = vadd.f32 0.0, %v665
      %v667 = vpop.f32.mrb[0].mxu0
      %v668 = vpop.f32.mrb[0].mxu0
      %669 = vdwg.mxu0
      %670 = vmatprep.subr.bf16.mxu0 0
      %671 = vmatpush1.bf16.msra.mxu0 %v627
      %672 = vmatprep.subr.bf16.mxu0 0
      %673 = vmatpush1.bf16.msra.mxu0 0
      %674 = vmatprep.subr.bf16.mxu0 0
      %675 = vmatpush1.bf16.msra.mxu0 0
      %676 = vmatprep.subr.bf16.mxu0 0
      %677 = vmatpush1.bf16.msra.mxu0 0
      %678 = vmatprep.subr.bf16.mxu0 0
      %679 = vmatpush1.bf16.msra.mxu0 0
      %680 = vmatprep.subr.bf16.mxu0 0
      %681 = vmatpush1.bf16.msra.mxu0 0
      %682 = vmatprep.subr.bf16.mxu0 0
      %683 = vmatpush1.bf16.msra.mxu0 0
      %684 = vmatprep.subr.bf16.mxu0 0
      %685 = vmatpush1.bf16.msra.mxu0 0
      %686 = vmatprep.subr.bf16.mxu0 0
      %687 = vmatpush1.bf16.msra.mxu0 0
      %688 = vmatprep.subr.bf16.mxu0 0
      %689 = vmatpush1.bf16.msra.mxu0 0
      %690 = vmatprep.subr.bf16.mxu0 0
      %691 = vmatpush1.bf16.msra.mxu0 0
      %692 = vmatprep.subr.bf16.mxu0 0
      %693 = vmatpush1.bf16.msra.mxu0 0
      %694 = vmatprep.subr.bf16.mxu0 0
      %695 = vmatpush1.bf16.msra.mxu0 0
      %696 = vmatprep.subr.bf16.mxu0 0
      %697 = vmatpush1.bf16.msra.mxu0 0
      %698 = vmatprep.subr.bf16.mxu0 0
      %699 = vmatpush1.bf16.msra.mxu0 0
      %700 = vmatprep.subr.bf16.mxu0 0
      %701 = vmatpush1.bf16.msra.mxu0 0
      %702 = vmatprep.mubr.bf16.mxu0 0
      %703 = vmatmul.mubr.bf16.gmra.mrb[0].mxu0 %v618
      %v704 = vpop.f32.mrb[0].mxu0
      %v705 = vadd.f32 0.0, %v704
      %v706 = vpop.f32.mrb[0].mxu0
      %v707 = vpop.f32.mrb[0].mxu0
      %v708 = vpop.f32.mrb[0].mxu0
      %709 = vdwg.mxu0
      %v711 = vsel %vm616, %v597, 0
      %v714 = vsel %vm429, %v598, 0
      %v717 = vsel %vm429, %v599, 0
      %v720 = vsel %vm429, %v600, 0
      %722 = vmatprep.subr.bf16.mxu0 %v717
      %723 = vmatpush1.bf16.msra.mxu0 %v714
      %724 = vmatprep.subr.bf16.mxu0 0
      %725 = vmatpush1.bf16.msra.mxu0 0
      %726 = vmatprep.subr.bf16.mxu0 0
      %727 = vmatpush1.bf16.msra.mxu0 0
      %728 = vmatprep.subr.bf16.mxu0 0
      %729 = vmatpush1.bf16.msra.mxu0 0
      %730 = vmatprep.subr.bf16.mxu0 0
      %731 = vmatpush1.bf16.msra.mxu0 0
      %732 = vmatprep.subr.bf16.mxu0 0
      %733 = vmatpush1.bf16.msra.mxu0 0
      %734 = vmatprep.subr.bf16.mxu0 0
      %735 = vmatpush1.bf16.msra.mxu0 0
      %736 = vmatprep.subr.bf16.mxu0 0
      %737 = vmatpush1.bf16.msra.mxu0 0
      %738 = vmatprep.subr.bf16.mxu0 0
      %739 = vmatpush1.bf16.msra.mxu0 0
      %740 = vmatprep.subr.bf16.mxu0 0
      %741 = vmatpush1.bf16.msra.mxu0 0
      %742 = vmatprep.subr.bf16.mxu0 0
      %743 = vmatpush1.bf16.msra.mxu0 0
      %744 = vmatprep.subr.bf16.mxu0 0
      %745 = vmatpush1.bf16.msra.mxu0 0
      %746 = vmatprep.subr.bf16.mxu0 0
      %747 = vmatpush1.bf16.msra.mxu0 0
      %748 = vmatprep.subr.bf16.mxu0 0
      %749 = vmatpush1.bf16.msra.mxu0 0
      %750 = vmatprep.subr.bf16.mxu0 0
      %751 = vmatpush1.bf16.msra.mxu0 0
      %752 = vmatprep.subr.bf16.mxu0 0
      %753 = vmatpush1.bf16.msra.mxu0 0
      %754 = vmatprep.mubr.bf16.mxu0 0
      %755 = vmatmul.mubr.bf16.gmra.mrb[0].mxu0 %v711
      %v756 = vpop.f32.mrb[0].mxu0
      %v757 = vadd.f32 %v664, %v756
      %v758 = vpop.f32.mrb[0].mxu0
      %v759 = vadd.f32 %v666, %v758
      %v760 = vpop.f32.mrb[0].mxu0
      %v761 = vpop.f32.mrb[0].mxu0
      %762 = vdwg.mxu0
      %763 = vmatprep.subr.bf16.mxu0 0
      %764 = vmatpush1.bf16.msra.mxu0 %v720
      %765 = vmatprep.subr.bf16.mxu0 0
      %766 = vmatpush1.bf16.msra.mxu0 0
      %767 = vmatprep.subr.bf16.mxu0 0
      %768 = vmatpush1.bf16.msra.mxu0 0
      %769 = vmatprep.subr.bf16.mxu0 0
      %770 = vmatpush1.bf16.msra.mxu0 0
      %771 = vmatprep.subr.bf16.mxu0 0
      %772 = vmatpush1.bf16.msra.mxu0 0
      %773 = vmatprep.subr.bf16.mxu0 0
      %774 = vmatpush1.bf16.msra.mxu0 0
      %775 = vmatprep.subr.bf16.mxu0 0
      %776 = vmatpush1.bf16.msra.mxu0 0
      %777 = vmatprep.subr.bf16.mxu0 0
      %778 = vmatpush1.bf16.msra.mxu0 0
      %779 = vmatprep.subr.bf16.mxu0 0
      %780 = vmatpush1.bf16.msra.mxu0 0
      %781 = vmatprep.subr.bf16.mxu0 0
      %782 = vmatpush1.bf16.msra.mxu0 0
      %783 = vmatprep.subr.bf16.mxu0 0
      %784 = vmatpush1.bf16.msra.mxu0 0
      %785 = vmatprep.subr.bf16.mxu0 0
      %786 = vmatpush1.bf16.msra.mxu0 0
      %787 = vmatprep.subr.bf16.mxu0 0
      %788 = vmatpush1.bf16.msra.mxu0 0
      %789 = vmatprep.subr.bf16.mxu0 0
      %790 = vmatpush1.bf16.msra.mxu0 0
      %791 = vmatprep.subr.bf16.mxu0 0
      %792 = vmatpush1.bf16.msra.mxu0 0
      %793 = vmatprep.subr.bf16.mxu0 0
      %794 = vmatpush1.bf16.msra.mxu0 0
      %795 = vmatprep.mubr.bf16.mxu0 0
      %796 = vmatmul.mubr.bf16.gmra.mrb[0].mxu0 %v711
      %v797 = vpop.f32.mrb[0].mxu0
      %v798 = vadd.f32 %v705, %v797
      %v799 = vpop.f32.mrb[0].mxu0
      %v800 = vpop.f32.mrb[0].mxu0
      %v801 = vpop.f32.mrb[0].mxu0
      %802 = vdwg.mxu0
      %803 = vrot.lane.b32.xlu0 %v582, 17
      %v804 = vpop.permute.xlu0 %803
      %805 = vrot.lane.b32.xlu0 %v583, 17
      %v806 = vpop.permute.xlu0 %805
      %807 = vrot.lane.b32.xlu0 %v584, 17
      %v808 = vpop.permute.xlu0 %807
      %vm809 = vcmp.lt.s32.totalorder %v592, 17
      %v810 = vsel %vm809, %v806, %v808
      %v811 = vsel %vm809, %v804, %v806
      %v812 = vsel %vm809, %v808, %v804
      %s813 = scalar_lea.vmem %s3, 8
      %v814 = vld [vmem:[%s813] sm:$0xf]
      %v815 = vpack.c.bf16 %v812, %v812
      %v816 = vpack.c.bf16 %v811, %v811
      %v817 = vpack.c.bf16 %v810, %v810
      %v819 = vsel %vm616, %v814, 0
      %v822 = vsel %vm429, %v815, 0
      %v825 = vsel %vm429, %v816, 0
      %v828 = vsel %vm429, %v817, 0
      %830 = vmatprep.subr.bf16.mxu0 %v825
      %831 = vmatpush1.bf16.msra.mxu0 %v822
      %832 = vmatprep.subr.bf16.mxu0 0
      %833 = vmatpush1.bf16.msra.mxu0 0
      %834 = vmatprep.subr.bf16.mxu0 0
      %835 = vmatpush1.bf16.msra.mxu0 0
      %836 = vmatprep.subr.bf16.mxu0 0
      %837 = vmatpush1.bf16.msra.mxu0 0
      %838 = vmatprep.subr.bf16.mxu0 0
      %839 = vmatpush1.bf16.msra.mxu0 0
      %840 = vmatprep.subr.bf16.mxu0 0
      %841 = vmatpush1.bf16.msra.mxu0 0
      %842 = vmatprep.subr.bf16.mxu0 0
      %843 = vmatpush1.bf16.msra.mxu0 0
      %844 = vmatprep.subr.bf16.mxu0 0
      %845 = vmatpush1.bf16.msra.mxu0 0
      %846 = vmatprep.subr.bf16.mxu0 0
      %847 = vmatpush1.bf16.msra.mxu0 0
      %848 = vmatprep.subr.bf16.mxu0 0
      %849 = vmatpush1.bf16.msra.mxu0 0
      %850 = vmatprep.subr.bf16.mxu0 0
      %851 = vmatpush1.bf16.msra.mxu0 0
      %852 = vmatprep.subr.bf16.mxu0 0
      %853 = vmatpush1.bf16.msra.mxu0 0
      %854 = vmatprep.subr.bf16.mxu0 0
      %855 = vmatpush1.bf16.msra.mxu0 0
      %856 = vmatprep.subr.bf16.mxu0 0
      %857 = vmatpush1.bf16.msra.mxu0 0
      %858 = vmatprep.subr.bf16.mxu0 0
      %859 = vmatpush1.bf16.msra.mxu0 0
      %860 = vmatprep.subr.bf16.mxu0 0
      %861 = vmatpush1.bf16.msra.mxu0 0
      %862 = vmatprep.mubr.bf16.mxu0 0
      %863 = vmatmul.mubr.bf16.gmra.mrb[0].mxu0 %v819
      %v864 = vpop.f32.mrb[0].mxu0
      %v865 = vadd.f32 0.0, %v864
      %v866 = vpop.f32.mrb[0].mxu0
      %v867 = vadd.f32 0.0, %v866
      %v868 = vpop.f32.mrb[0].mxu0
      %v869 = vpop.f32.mrb[0].mxu0
      %870 = vdwg.mxu0
      %871 = vmatprep.subr.bf16.mxu0 0
      %872 = vmatpush1.bf16.msra.mxu0 %v828
      %873 = vmatprep.subr.bf16.mxu0 0
      %874 = vmatpush1.bf16.msra.mxu0 0
      %875 = vmatprep.subr.bf16.mxu0 0
      %876 = vmatpush1.bf16.msra.mxu0 0
      %877 = vmatprep.subr.bf16.mxu0 0
      %878 = vmatpush1.bf16.msra.mxu0 0
      %879 = vmatprep.subr.bf16.mxu0 0
      %880 = vmatpush1.bf16.msra.mxu0 0
      %881 = vmatprep.subr.bf16.mxu0 0
      %882 = vmatpush1.bf16.msra.mxu0 0
      %883 = vmatprep.subr.bf16.mxu0 0
      %884 = vmatpush1.bf16.msra.mxu0 0
      %885 = vmatprep.subr.bf16.mxu0 0
      %886 = vmatpush1.bf16.msra.mxu0 0
      %887 = vmatprep.subr.bf16.mxu0 0
      %888 = vmatpush1.bf16.msra.mxu0 0
      %889 = vmatprep.subr.bf16.mxu0 0
      %890 = vmatpush1.bf16.msra.mxu0 0
      %891 = vmatprep.subr.bf16.mxu0 0
      %892 = vmatpush1.bf16.msra.mxu0 0
      %893 = vmatprep.subr.bf16.mxu0 0
      %894 = vmatpush1.bf16.msra.mxu0 0
      %895 = vmatprep.subr.bf16.mxu0 0
      %896 = vmatpush1.bf16.msra.mxu0 0
      %897 = vmatprep.subr.bf16.mxu0 0
      %898 = vmatpush1.bf16.msra.mxu0 0
      %899 = vmatprep.subr.bf16.mxu0 0
      %900 = vmatpush1.bf16.msra.mxu0 0
      %901 = vmatprep.subr.bf16.mxu0 0
      %902 = vmatpush1.bf16.msra.mxu0 0
      %903 = vmatprep.mubr.bf16.mxu0 0
      %904 = vmatmul.mubr.bf16.gmra.mrb[0].mxu0 %v819
      %v905 = vpop.f32.mrb[0].mxu0
      %v906 = vadd.f32 0.0, %v905
      %v907 = vpop.f32.mrb[0].mxu0
      %v908 = vpop.f32.mrb[0].mxu0
      %v909 = vpop.f32.mrb[0].mxu0
      %910 = vdwg.mxu0
      %v911 = vadd.f32 %v757, %v865
      %v912 = vadd.f32 %v759, %v867
      %v913 = vadd.f32 %v798, %v906
      %914 = vrot.lane.b32.xlu0 %v582, 1
      %v915 = vpop.permute.xlu0 %914
      %916 = vrot.lane.b32.xlu0 %v583, 1
      %v917 = vpop.permute.xlu0 %916
      %918 = vrot.lane.b32.xlu0 %v584, 1
      %v919 = vpop.permute.xlu0 %918
      %vm920 = vcmp.lt.s32.totalorder %v592, 1
      %v921 = vsel %vm920, %v917, %v919
      %v922 = vsel %vm920, %v915, %v917
      %v923 = vsel %vm920, %v919, %v915
      %s924 = scalar_lea.vmem %s3, 12
      %v925 = vld [vmem:[%s924] sm:$0xf]
      %v926 = vpack.c.bf16 %v923, %v923
      %v927 = vpack.c.bf16 %v922, %v922
      %v928 = vpack.c.bf16 %v921, %v921
      %v930 = vsel %vm616, %v925, 0
      %v933 = vsel %vm429, %v926, 0
      %v936 = vsel %vm429, %v927, 0
      %v939 = vsel %vm429, %v928, 0
      %941 = vmatprep.subr.bf16.mxu0 %v936
      %942 = vmatpush1.bf16.msra.mxu0 %v933
      %943 = vmatprep.subr.bf16.mxu0 0
      %944 = vmatpush1.bf16.msra.mxu0 0
      %945 = vmatprep.subr.bf16.mxu0 0
      %946 = vmatpush1.bf16.msra.mxu0 0
      %947 = vmatprep.subr.bf16.mxu0 0
      %948 = vmatpush1.bf16.msra.mxu0 0
      %949 = vmatprep.subr.bf16.mxu0 0
      %950 = vmatpush1.bf16.msra.mxu0 0
      %951 = vmatprep.subr.bf16.mxu0 0
      %952 = vmatpush1.bf16.msra.mxu0 0
      %953 = vmatprep.subr.bf16.mxu0 0
      %954 = vmatpush1.bf16.msra.mxu0 0
      %955 = vmatprep.subr.bf16.mxu0 0
      %956 = vmatpush1.bf16.msra.mxu0 0
      %957 = vmatprep.subr.bf16.mxu0 0
      %958 = vmatpush1.bf16.msra.mxu0 0
      %959 = vmatprep.subr.bf16.mxu0 0
      %960 = vmatpush1.bf16.msra.mxu0 0
      %961 = vmatprep.subr.bf16.mxu0 0
      %962 = vmatpush1.bf16.msra.mxu0 0
      %963 = vmatprep.subr.bf16.mxu0 0
      %964 = vmatpush1.bf16.msra.mxu0 0
      %965 = vmatprep.subr.bf16.mxu0 0
      %966 = vmatpush1.bf16.msra.mxu0 0
      %967 = vmatprep.subr.bf16.mxu0 0
      %968 = vmatpush1.bf16.msra.mxu0 0
      %969 = vmatprep.subr.bf16.mxu0 0
      %970 = vmatpush1.bf16.msra.mxu0 0
      %971 = vmatprep.subr.bf16.mxu0 0
      %972 = vmatpush1.bf16.msra.mxu0 0
      %973 = vmatprep.mubr.bf16.mxu0 0
      %974 = vmatmul.mubr.bf16.gmra.mrb[0].mxu0 %v930
      %v975 = vpop.f32.mrb[0].mxu0
      %v976 = vadd.f32 0.0, %v975
      %v977 = vpop.f32.mrb[0].mxu0
      %v978 = vadd.f32 0.0, %v977
      %v979 = vpop.f32.mrb[0].mxu0
      %v980 = vpop.f32.mrb[0].mxu0
      %981 = vdwg.mxu0
      %982 = vmatprep.subr.bf16.mxu0 0
      %983 = vmatpush1.bf16.msra.mxu0 %v939
      %984 = vmatprep.subr.bf16.mxu0 0
      %985 = vmatpush1.bf16.msra.mxu0 0
      %986 = vmatprep.subr.bf16.mxu0 0
      %987 = vmatpush1.bf16.msra.mxu0 0
      %988 = vmatprep.subr.bf16.mxu0 0
      %989 = vmatpush1.bf16.msra.mxu0 0
      %990 = vmatprep.subr.bf16.mxu0 0
      %991 = vmatpush1.bf16.msra.mxu0 0
      %992 = vmatprep.subr.bf16.mxu0 0
      %993 = vmatpush1.bf16.msra.mxu0 0
      %994 = vmatprep.subr.bf16.mxu0 0
      %995 = vmatpush1.bf16.msra.mxu0 0
      %996 = vmatprep.subr.bf16.mxu0 0
      %997 = vmatpush1.bf16.msra.mxu0 0
      %998 = vmatprep.subr.bf16.mxu0 0
      %999 = vmatpush1.bf16.msra.mxu0 0
      %1000 = vmatprep.subr.bf16.mxu0 0
      %1001 = vmatpush1.bf16.msra.mxu0 0
      %1002 = vmatprep.subr.bf16.mxu0 0
      %1003 = vmatpush1.bf16.msra.mxu0 0
      %1004 = vmatprep.subr.bf16.mxu0 0
      %1005 = vmatpush1.bf16.msra.mxu0 0
      %1006 = vmatprep.subr.bf16.mxu0 0
      %1007 = vmatpush1.bf16.msra.mxu0 0
      %1008 = vmatprep.subr.bf16.mxu0 0
      %1009 = vmatpush1.bf16.msra.mxu0 0
      %1010 = vmatprep.subr.bf16.mxu0 0
      %1011 = vmatpush1.bf16.msra.mxu0 0
      %1012 = vmatprep.subr.bf16.mxu0 0
      %1013 = vmatpush1.bf16.msra.mxu0 0
      %1014 = vmatprep.mubr.bf16.mxu0 0
      %1015 = vmatmul.mubr.bf16.gmra.mrb[0].mxu0 %v930
      %v1016 = vpop.f32.mrb[0].mxu0
      %v1017 = vadd.f32 0.0, %v1016
      %v1018 = vpop.f32.mrb[0].mxu0
      %v1019 = vpop.f32.mrb[0].mxu0
      %v1020 = vpop.f32.mrb[0].mxu0
      %1021 = vdwg.mxu0
      %v1022 = vadd.f32 %v911, %v976
      %v1023 = vadd.f32 %v912, %v978
      %v1024 = vadd.f32 %v913, %v1017
      %s1025 = scalar_lea.vmem %s3, 16
      %v1026 = vld [vmem:[%s1025] sm:$0xf]
      %v1027 = vpack.c.bf16 %v582, %v582
      %v1028 = vpack.c.bf16 %v583, %v583
      %v1029 = vpack.c.bf16 %v584, %v584
      %v1031 = vsel %vm616, %v1026, 0
      %v1034 = vsel %vm429, %v1027, 0
      %v1037 = vsel %vm429, %v1028, 0
      %v1040 = vsel %vm429, %v1029, 0
      %1042 = vmatprep.subr.bf16.mxu0 %v1037
      %1043 = vmatpush1.bf16.msra.mxu0 %v1034
      %1044 = vmatprep.subr.bf16.mxu0 0
      %1045 = vmatpush1.bf16.msra.mxu0 0
      %1046 = vmatprep.subr.bf16.mxu0 0
      %1047 = vmatpush1.bf16.msra.mxu0 0
      %1048 = vmatprep.subr.bf16.mxu0 0
      %1049 = vmatpush1.bf16.msra.mxu0 0
      %1050 = vmatprep.subr.bf16.mxu0 0
      %1051 = vmatpush1.bf16.msra.mxu0 0
      %1052 = vmatprep.subr.bf16.mxu0 0
      %1053 = vmatpush1.bf16.msra.mxu0 0
      %1054 = vmatprep.subr.bf16.mxu0 0
      %1055 = vmatpush1.bf16.msra.mxu0 0
      %1056 = vmatprep.subr.bf16.mxu0 0
      %1057 = vmatpush1.bf16.msra.mxu0 0
      %1058 = vmatprep.subr.bf16.mxu0 0
      %1059 = vmatpush1.bf16.msra.mxu0 0
      %1060 = vmatprep.subr.bf16.mxu0 0
      %1061 = vmatpush1.bf16.msra.mxu0 0
      %1062 = vmatprep.subr.bf16.mxu0 0
      %1063 = vmatpush1.bf16.msra.mxu0 0
      %1064 = vmatprep.subr.bf16.mxu0 0
      %1065 = vmatpush1.bf16.msra.mxu0 0
      %1066 = vmatprep.subr.bf16.mxu0 0
      %1067 = vmatpush1.bf16.msra.mxu0 0
      %1068 = vmatprep.subr.bf16.mxu0 0
      %1069 = vmatpush1.bf16.msra.mxu0 0
      %1070 = vmatprep.subr.bf16.mxu0 0
      %1071 = vmatpush1.bf16.msra.mxu0 0
      %1072 = vmatprep.subr.bf16.mxu0 0
      %1073 = vmatpush1.bf16.msra.mxu0 0
      %1074 = vmatprep.mubr.bf16.mxu0 0
      %1075 = vmatmul.mubr.bf16.gmra.mrb[0].mxu0 %v1031
      %v1076 = vpop.f32.mrb[0].mxu0
      %v1077 = vadd.f32 0.0, %v1076
      %v1078 = vpop.f32.mrb[0].mxu0
      %v1079 = vadd.f32 0.0, %v1078
      %v1080 = vpop.f32.mrb[0].mxu0
      %v1081 = vpop.f32.mrb[0].mxu0
      %1082 = vdwg.mxu0
      %1083 = vmatprep.subr.bf16.mxu0 0
      %1084 = vmatpush1.bf16.msra.mxu0 %v1040
      %1085 = vmatprep.subr.bf16.mxu0 0
      %1086 = vmatpush1.bf16.msra.mxu0 0
      %1087 = vmatprep.subr.bf16.mxu0 0
      %1088 = vmatpush1.bf16.msra.mxu0 0
      %1089 = vmatprep.subr.bf16.mxu0 0
      %1090 = vmatpush1.bf16.msra.mxu0 0
      %1091 = vmatprep.subr.bf16.mxu0 0
      %1092 = vmatpush1.bf16.msra.mxu0 0
      %1093 = vmatprep.subr.bf16.mxu0 0
      %1094 = vmatpush1.bf16.msra.mxu0 0
      %1095 = vmatprep.subr.bf16.mxu0 0
      %1096 = vmatpush1.bf16.msra.mxu0 0
      %1097 = vmatprep.subr.bf16.mxu0 0
      %1098 = vmatpush1.bf16.msra.mxu0 0
      %1099 = vmatprep.subr.bf16.mxu0 0
      %1100 = vmatpush1.bf16.msra.mxu0 0
      %1101 = vmatprep.subr.bf16.mxu0 0
      %1102 = vmatpush1.bf16.msra.mxu0 0
      %1103 = vmatprep.subr.bf16.mxu0 0
      %1104 = vmatpush1.bf16.msra.mxu0 0
      %1105 = vmatprep.subr.bf16.mxu0 0
      %1106 = vmatpush1.bf16.msra.mxu0 0
      %1107 = vmatprep.subr.bf16.mxu0 0
      %1108 = vmatpush1.bf16.msra.mxu0 0
      %1109 = vmatprep.subr.bf16.mxu0 0
      %1110 = vmatpush1.bf16.msra.mxu0 0
      %1111 = vmatprep.subr.bf16.mxu0 0
      %1112 = vmatpush1.bf16.msra.mxu0 0
      %1113 = vmatprep.subr.bf16.mxu0 0
      %1114 = vmatpush1.bf16.msra.mxu0 0
      %1115 = vmatprep.mubr.bf16.mxu0 0
      %1116 = vmatmul.mubr.bf16.gmra.mrb[0].mxu0 %v1031
      %v1117 = vpop.f32.mrb[0].mxu0
      %v1118 = vadd.f32 0.0, %v1117
      %v1119 = vpop.f32.mrb[0].mxu0
      %v1120 = vpop.f32.mrb[0].mxu0
      %v1121 = vpop.f32.mrb[0].mxu0
      %1122 = vdwg.mxu0
      %v1123 = vadd.f32 %v1022, %v1077
      %v1124 = vadd.f32 %v1023, %v1079
      %v1125 = vadd.f32 %v1024, %v1118
      %1126 = vrot.lane.b32.xlu0 %v582, 127
      %v1127 = vpop.permute.xlu0 %1126
      %1128 = vrot.lane.b32.xlu0 %v583, 127
      %v1129 = vpop.permute.xlu0 %1128
      %1130 = vrot.lane.b32.xlu0 %v584, 127
      %v1131 = vpop.permute.xlu0 %1130
      %vm1132 = vcmp.lt.s32.totalorder %v592, 127
      %v1133 = vsel %vm1132, %v1129, %v1131
      %v1134 = vsel %vm1132, %v1127, %v1129
      %v1135 = vsel %vm1132, %v1131, %v1127
      %s1136 = scalar_lea.vmem %s3, 20
      %v1137 = vld [vmem:[%s1136] sm:$0xf]
      %v1138 = vpack.c.bf16 %v1134, %v1134
      %v1139 = vpack.c.bf16 %v1133, %v1133
      %v1140 = vpack.c.bf16 %v1135, %v1135
      %v1142 = vsel %vm616, %v1137, 0
      %v1145 = vsel %vm429, %v1138, 0
      %v1148 = vsel %vm429, %v1139, 0
      %v1151 = vsel %vm429, %v1140, 0
      %1153 = vmatprep.subr.bf16.mxu0 %v1148
      %1154 = vmatpush1.bf16.msra.mxu0 %v1145
      %1155 = vmatprep.subr.bf16.mxu0 0
      %1156 = vmatpush1.bf16.msra.mxu0 0
      %1157 = vmatprep.subr.bf16.mxu0 0
      %1158 = vmatpush1.bf16.msra.mxu0 0
      %1159 = vmatprep.subr.bf16.mxu0 0
      %1160 = vmatpush1.bf16.msra.mxu0 0
      %1161 = vmatprep.subr.bf16.mxu0 0
      %1162 = vmatpush1.bf16.msra.mxu0 0
      %1163 = vmatprep.subr.bf16.mxu0 0
      %1164 = vmatpush1.bf16.msra.mxu0 0
      %1165 = vmatprep.subr.bf16.mxu0 0
      %1166 = vmatpush1.bf16.msra.mxu0 0
      %1167 = vmatprep.subr.bf16.mxu0 0
      %1168 = vmatpush1.bf16.msra.mxu0 0
      %1169 = vmatprep.subr.bf16.mxu0 0
      %1170 = vmatpush1.bf16.msra.mxu0 0
      %1171 = vmatprep.subr.bf16.mxu0 0
      %1172 = vmatpush1.bf16.msra.mxu0 0
      %1173 = vmatprep.subr.bf16.mxu0 0
      %1174 = vmatpush1.bf16.msra.mxu0 0
      %1175 = vmatprep.subr.bf16.mxu0 0
      %1176 = vmatpush1.bf16.msra.mxu0 0
      %1177 = vmatprep.subr.bf16.mxu0 0
      %1178 = vmatpush1.bf16.msra.mxu0 0
      %1179 = vmatprep.subr.bf16.mxu0 0
      %1180 = vmatpush1.bf16.msra.mxu0 0
      %1181 = vmatprep.subr.bf16.mxu0 0
      %1182 = vmatpush1.bf16.msra.mxu0 0
      %1183 = vmatprep.subr.bf16.mxu0 0
      %1184 = vmatpush1.bf16.msra.mxu0 0
      %1185 = vmatprep.mubr.bf16.mxu0 0
      %1186 = vmatmul.mubr.bf16.gmra.mrb[0].mxu0 %v1142
      %v1187 = vpop.f32.mrb[0].mxu0
      %v1188 = vadd.f32 0.0, %v1187
      %v1189 = vpop.f32.mrb[0].mxu0
      %v1190 = vadd.f32 0.0, %v1189
      %v1191 = vpop.f32.mrb[0].mxu0
      %v1192 = vpop.f32.mrb[0].mxu0
      %1193 = vdwg.mxu0
      %1194 = vmatprep.subr.bf16.mxu0 0
      %1195 = vmatpush1.bf16.msra.mxu0 %v1151
      %1196 = vmatprep.subr.bf16.mxu0 0
      %1197 = vmatpush1.bf16.msra.mxu0 0
      %1198 = vmatprep.subr.bf16.mxu0 0
      %1199 = vmatpush1.bf16.msra.mxu0 0
      %1200 = vmatprep.subr.bf16.mxu0 0
      %1201 = vmatpush1.bf16.msra.mxu0 0
      %1202 = vmatprep.subr.bf16.mxu0 0
      %1203 = vmatpush1.bf16.msra.mxu0 0
      %1204 = vmatprep.subr.bf16.mxu0 0
      %1205 = vmatpush1.bf16.msra.mxu0 0
      %1206 = vmatprep.subr.bf16.mxu0 0
      %1207 = vmatpush1.bf16.msra.mxu0 0
      %1208 = vmatprep.subr.bf16.mxu0 0
      %1209 = vmatpush1.bf16.msra.mxu0 0
      %1210 = vmatprep.subr.bf16.mxu0 0
      %1211 = vmatpush1.bf16.msra.mxu0 0
      %1212 = vmatprep.subr.bf16.mxu0 0
      %1213 = vmatpush1.bf16.msra.mxu0 0
      %1214 = vmatprep.subr.bf16.mxu0 0
      %1215 = vmatpush1.bf16.msra.mxu0 0
      %1216 = vmatprep.subr.bf16.mxu0 0
      %1217 = vmatpush1.bf16.msra.mxu0 0
      %1218 = vmatprep.subr.bf16.mxu0 0
      %1219 = vmatpush1.bf16.msra.mxu0 0
      %1220 = vmatprep.subr.bf16.mxu0 0
      %1221 = vmatpush1.bf16.msra.mxu0 0
      %1222 = vmatprep.subr.bf16.mxu0 0
      %1223 = vmatpush1.bf16.msra.mxu0 0
      %1224 = vmatprep.subr.bf16.mxu0 0
      %1225 = vmatpush1.bf16.msra.mxu0 0
      %1226 = vmatprep.mubr.bf16.mxu0 0
      %1227 = vmatmul.mubr.bf16.gmra.mrb[0].mxu0 %v1142
      %v1228 = vpop.f32.mrb[0].mxu0
      %v1229 = vadd.f32 0.0, %v1228
      %v1230 = vpop.f32.mrb[0].mxu0
      %v1231 = vpop.f32.mrb[0].mxu0
      %v1232 = vpop.f32.mrb[0].mxu0
      %1233 = vdwg.mxu0
      %v1234 = vadd.f32 %v1123, %v1188
      %v1235 = vadd.f32 %v1124, %v1190
      %v1236 = vadd.f32 %v1125, %v1229
      %1237 = vrot.lane.b32.xlu0 %v582, 111
      %v1238 = vpop.permute.xlu0 %1237
      %1239 = vrot.lane.b32.xlu0 %v583, 111
      %v1240 = vpop.permute.xlu0 %1239
      %1241 = vrot.lane.b32.xlu0 %v584, 111
      %v1242 = vpop.permute.xlu0 %1241
      %vm1243 = vcmp.lt.s32.totalorder %v592, 111
      %v1244 = vsel %vm1243, %v1240, %v1242
      %v1245 = vsel %vm1243, %v1238, %v1240
      %v1246 = vsel %vm1243, %v1242, %v1238
      %s1247 = scalar_lea.vmem %s3, 24
      %v1248 = vld [vmem:[%s1247] sm:$0xf]
      %v1249 = vpack.c.bf16 %v1245, %v1245
      %v1250 = vpack.c.bf16 %v1244, %v1244
      %v1251 = vpack.c.bf16 %v1246, %v1246
      %v1253 = vsel %vm616, %v1248, 0
      %v1256 = vsel %vm429, %v1249, 0
      %v1259 = vsel %vm429, %v1250, 0
      %v1262 = vsel %vm429, %v1251, 0
      %1264 = vmatprep.subr.bf16.mxu0 %v1259
      %1265 = vmatpush1.bf16.msra.mxu0 %v1256
      %1266 = vmatprep.subr.bf16.mxu0 0
      %1267 = vmatpush1.bf16.msra.mxu0 0
      %1268 = vmatprep.subr.bf16.mxu0 0
      %1269 = vmatpush1.bf16.msra.mxu0 0
      %1270 = vmatprep.subr.bf16.mxu0 0
      %1271 = vmatpush1.bf16.msra.mxu0 0
      %1272 = vmatprep.subr.bf16.mxu0 0
      %1273 = vmatpush1.bf16.msra.mxu0 0
      %1274 = vmatprep.subr.bf16.mxu0 0
      %1275 = vmatpush1.bf16.msra.mxu0 0
      %1276 = vmatprep.subr.bf16.mxu0 0
      %1277 = vmatpush1.bf16.msra.mxu0 0
      %1278 = vmatprep.subr.bf16.mxu0 0
      %1279 = vmatpush1.bf16.msra.mxu0 0
      %1280 = vmatprep.subr.bf16.mxu0 0
      %1281 = vmatpush1.bf16.msra.mxu0 0
      %1282 = vmatprep.subr.bf16.mxu0 0
      %1283 = vmatpush1.bf16.msra.mxu0 0
      %1284 = vmatprep.subr.bf16.mxu0 0
      %1285 = vmatpush1.bf16.msra.mxu0 0
      %1286 = vmatprep.subr.bf16.mxu0 0
      %1287 = vmatpush1.bf16.msra.mxu0 0
      %1288 = vmatprep.subr.bf16.mxu0 0
      %1289 = vmatpush1.bf16.msra.mxu0 0
      %1290 = vmatprep.subr.bf16.mxu0 0
      %1291 = vmatpush1.bf16.msra.mxu0 0
      %1292 = vmatprep.subr.bf16.mxu0 0
      %1293 = vmatpush1.bf16.msra.mxu0 0
      %1294 = vmatprep.subr.bf16.mxu0 0
      %1295 = vmatpush1.bf16.msra.mxu0 0
      %1296 = vmatprep.mubr.bf16.mxu0 0
      %1297 = vmatmul.mubr.bf16.gmra.mrb[0].mxu0 %v1253
      %v1298 = vpop.f32.mrb[0].mxu0
      %v1299 = vadd.f32 0.0, %v1298
      %v1300 = vpop.f32.mrb[0].mxu0
      %v1301 = vadd.f32 0.0, %v1300
      %v1302 = vpop.f32.mrb[0].mxu0
      %v1303 = vpop.f32.mrb[0].mxu0
      %1304 = vdwg.mxu0
      %1305 = vmatprep.subr.bf16.mxu0 0
      %1306 = vmatpush1.bf16.msra.mxu0 %v1262
      %1307 = vmatprep.subr.bf16.mxu0 0
      %1308 = vmatpush1.bf16.msra.mxu0 0
      %1309 = vmatprep.subr.bf16.mxu0 0
      %1310 = vmatpush1.bf16.msra.mxu0 0
      %1311 = vmatprep.subr.bf16.mxu0 0
      %1312 = vmatpush1.bf16.msra.mxu0 0
      %1313 = vmatprep.subr.bf16.mxu0 0
      %1314 = vmatpush1.bf16.msra.mxu0 0
      %1315 = vmatprep.subr.bf16.mxu0 0
      %1316 = vmatpush1.bf16.msra.mxu0 0
      %1317 = vmatprep.subr.bf16.mxu0 0
      %1318 = vmatpush1.bf16.msra.mxu0 0
      %1319 = vmatprep.subr.bf16.mxu0 0
      %1320 = vmatpush1.bf16.msra.mxu0 0
      %1321 = vmatprep.subr.bf16.mxu0 0
      %1322 = vmatpush1.bf16.msra.mxu0 0
      %1323 = vmatprep.subr.bf16.mxu0 0
      %1324 = vmatpush1.bf16.msra.mxu0 0
      %1325 = vmatprep.subr.bf16.mxu0 0
      %1326 = vmatpush1.bf16.msra.mxu0 0
      %1327 = vmatprep.subr.bf16.mxu0 0
      %1328 = vmatpush1.bf16.msra.mxu0 0
      %1329 = vmatprep.subr.bf16.mxu0 0
      %1330 = vmatpush1.bf16.msra.mxu0 0
      %1331 = vmatprep.subr.bf16.mxu0 0
      %1332 = vmatpush1.bf16.msra.mxu0 0
      %1333 = vmatprep.subr.bf16.mxu0 0
      %1334 = vmatpush1.bf16.msra.mxu0 0
      %1335 = vmatprep.subr.bf16.mxu0 0
      %1336 = vmatpush1.bf16.msra.mxu0 0
      %1337 = vmatprep.mubr.bf16.mxu0 0
      %1338 = vmatmul.mubr.bf16.gmra.mrb[0].mxu0 %v1253
      %v1339 = vpop.f32.mrb[0].mxu0
      %v1340 = vadd.f32 0.0, %v1339
      %v1341 = vpop.f32.mrb[0].mxu0
      %v1342 = vpop.f32.mrb[0].mxu0
      %v1343 = vpop.f32.mrb[0].mxu0
      %1344 = vdwg.mxu0
      %v1345 = vadd.f32 %v1234, %v1299
      %v1346 = vadd.f32 %v1235, %v1301
      %v1347 = vadd.f32 %v1236, %v1340
      %1348 = vrot.lane.b32.xlu0 %v582, 110
      %v1349 = vpop.permute.xlu0 %1348
      %1350 = vrot.lane.b32.xlu0 %v583, 110
      %v1351 = vpop.permute.xlu0 %1350
      %1352 = vrot.lane.b32.xlu0 %v584, 110
      %v1353 = vpop.permute.xlu0 %1352
      %vm1354 = vcmp.lt.s32.totalorder %v592, 110
      %v1355 = vsel %vm1354, %v1351, %v1353
      %v1356 = vsel %vm1354, %v1349, %v1351
      %v1357 = vsel %vm1354, %v1353, %v1349
      %s1358 = scalar_lea.vmem %s3, 28
      %v1359 = vld [vmem:[%s1358] sm:$0xf]
      %v1360 = vpack.c.bf16 %v1356, %v1356
      %v1361 = vpack.c.bf16 %v1355, %v1355
      %v1362 = vpack.c.bf16 %v1357, %v1357
      %v1364 = vsel %vm616, %v1359, 0
      %v1367 = vsel %vm429, %v1360, 0
      %v1370 = vsel %vm429, %v1361, 0
      %v1373 = vsel %vm429, %v1362, 0
      %1375 = vmatprep.subr.bf16.mxu0 %v1370
      %1376 = vmatpush1.bf16.msra.mxu0 %v1367
      %1377 = vmatprep.subr.bf16.mxu0 0
      %1378 = vmatpush1.bf16.msra.mxu0 0
      %1379 = vmatprep.subr.bf16.mxu0 0
      %1380 = vmatpush1.bf16.msra.mxu0 0
      %1381 = vmatprep.subr.bf16.mxu0 0
      %1382 = vmatpush1.bf16.msra.mxu0 0
      %1383 = vmatprep.subr.bf16.mxu0 0
      %1384 = vmatpush1.bf16.msra.mxu0 0
      %1385 = vmatprep.subr.bf16.mxu0 0
      %1386 = vmatpush1.bf16.msra.mxu0 0
      %1387 = vmatprep.subr.bf16.mxu0 0
      %1388 = vmatpush1.bf16.msra.mxu0 0
      %1389 = vmatprep.subr.bf16.mxu0 0
      %1390 = vmatpush1.bf16.msra.mxu0 0
      %1391 = vmatprep.subr.bf16.mxu0 0
      %1392 = vmatpush1.bf16.msra.mxu0 0
      %1393 = vmatprep.subr.bf16.mxu0 0
      %1394 = vmatpush1.bf16.msra.mxu0 0
      %1395 = vmatprep.subr.bf16.mxu0 0
      %1396 = vmatpush1.bf16.msra.mxu0 0
      %1397 = vmatprep.subr.bf16.mxu0 0
      %1398 = vmatpush1.bf16.msra.mxu0 0
      %1399 = vmatprep.subr.bf16.mxu0 0
      %1400 = vmatpush1.bf16.msra.mxu0 0
      %1401 = vmatprep.subr.bf16.mxu0 0
      %1402 = vmatpush1.bf16.msra.mxu0 0
      %1403 = vmatprep.subr.bf16.mxu0 0
      %1404 = vmatpush1.bf16.msra.mxu0 0
      %1405 = vmatprep.subr.bf16.mxu0 0
      %1406 = vmatpush1.bf16.msra.mxu0 0
      %1407 = vmatprep.mubr.bf16.mxu0 0
      %1408 = vmatmul.mubr.bf16.gmra.mrb[0].mxu0 %v1364
      %v1409 = vpop.f32.mrb[0].mxu0
      %v1410 = vadd.f32 0.0, %v1409
      %v1411 = vpop.f32.mrb[0].mxu0
      %v1412 = vadd.f32 0.0, %v1411
      %v1413 = vpop.f32.mrb[0].mxu0
      %v1414 = vpop.f32.mrb[0].mxu0
      %1415 = vdwg.mxu0
      %1416 = vmatprep.subr.bf16.mxu0 0
      %1417 = vmatpush1.bf16.msra.mxu0 %v1373
      %1418 = vmatprep.subr.bf16.mxu0 0
      %1419 = vmatpush1.bf16.msra.mxu0 0
      %1420 = vmatprep.subr.bf16.mxu0 0
      %1421 = vmatpush1.bf16.msra.mxu0 0
      %1422 = vmatprep.subr.bf16.mxu0 0
      %1423 = vmatpush1.bf16.msra.mxu0 0
      %1424 = vmatprep.subr.bf16.mxu0 0
      %1425 = vmatpush1.bf16.msra.mxu0 0
      %1426 = vmatprep.subr.bf16.mxu0 0
      %1427 = vmatpush1.bf16.msra.mxu0 0
      %1428 = vmatprep.subr.bf16.mxu0 0
      %1429 = vmatpush1.bf16.msra.mxu0 0
      %1430 = vmatprep.subr.bf16.mxu0 0
      %1431 = vmatpush1.bf16.msra.mxu0 0
      %1432 = vmatprep.subr.bf16.mxu0 0
      %1433 = vmatpush1.bf16.msra.mxu0 0
      %1434 = vmatprep.subr.bf16.mxu0 0
      %1435 = vmatpush1.bf16.msra.mxu0 0
      %1436 = vmatprep.subr.bf16.mxu0 0
      %1437 = vmatpush1.bf16.msra.mxu0 0
      %1438 = vmatprep.subr.bf16.mxu0 0
      %1439 = vmatpush1.bf16.msra.mxu0 0
      %1440 = vmatprep.subr.bf16.mxu0 0
      %1441 = vmatpush1.bf16.msra.mxu0 0
      %1442 = vmatprep.subr.bf16.mxu0 0
      %1443 = vmatpush1.bf16.msra.mxu0 0
      %1444 = vmatprep.subr.bf16.mxu0 0
      %1445 = vmatpush1.bf16.msra.mxu0 0
      %1446 = vmatprep.subr.bf16.mxu0 0
      %1447 = vmatpush1.bf16.msra.mxu0 0
      %1448 = vmatprep.mubr.bf16.mxu0 0
      %1449 = vmatmul.mubr.bf16.gmra.mrb[0].mxu0 %v1364
      %v1450 = vpop.f32.mrb[0].mxu0
      %v1451 = vadd.f32 0.0, %v1450
      %v1452 = vpop.f32.mrb[0].mxu0
      %v1453 = vpop.f32.mrb[0].mxu0
      %v1454 = vpop.f32.mrb[0].mxu0
      %1455 = vdwg.mxu0
      %v1456 = vadd.f32 %v1345, %v1410
      %v1457 = vadd.f32 %v1346, %v1412
      %v1458 = vadd.f32 %v1347, %v1451
      %1459 = vrot.lane.b32.xlu0 %v582, 109
      %v1460 = vpop.permute.xlu0 %1459
      %1461 = vrot.lane.b32.xlu0 %v583, 109
      %v1462 = vpop.permute.xlu0 %1461
      %1463 = vrot.lane.b32.xlu0 %v584, 109
      %v1464 = vpop.permute.xlu0 %1463
      %vm1465 = vcmp.lt.s32.totalorder %v592, 109
      %v1466 = vsel %vm1465, %v1462, %v1464
      %v1467 = vsel %vm1465, %v1460, %v1462
      %v1468 = vsel %vm1465, %v1464, %v1460
      %s1469 = scalar_lea.vmem %s3, 32
      %v1470 = vld [vmem:[%s1469] sm:$0xf]
      %v1471 = vpack.c.bf16 %v1467, %v1467
      %v1472 = vpack.c.bf16 %v1466, %v1466
      %v1473 = vpack.c.bf16 %v1468, %v1468
      %v1475 = vsel %vm616, %v1470, 0
      %v1478 = vsel %vm429, %v1471, 0
      %v1481 = vsel %vm429, %v1472, 0
      %v1484 = vsel %vm429, %v1473, 0
      %1486 = vmatprep.subr.bf16.mxu0 %v1481
      %1487 = vmatpush1.bf16.msra.mxu0 %v1478
      %1488 = vmatprep.subr.bf16.mxu0 0
      %1489 = vmatpush1.bf16.msra.mxu0 0
      %1490 = vmatprep.subr.bf16.mxu0 0
      %1491 = vmatpush1.bf16.msra.mxu0 0
      %1492 = vmatprep.subr.bf16.mxu0 0
      %1493 = vmatpush1.bf16.msra.mxu0 0
      %1494 = vmatprep.subr.bf16.mxu0 0
      %1495 = vmatpush1.bf16.msra.mxu0 0
      %1496 = vmatprep.subr.bf16.mxu0 0
      %1497 = vmatpush1.bf16.msra.mxu0 0
      %1498 = vmatprep.subr.bf16.mxu0 0
      %1499 = vmatpush1.bf16.msra.mxu0 0
      %1500 = vmatprep.subr.bf16.mxu0 0
      %1501 = vmatpush1.bf16.msra.mxu0 0
      %1502 = vmatprep.subr.bf16.mxu0 0
      %1503 = vmatpush1.bf16.msra.mxu0 0
      %1504 = vmatprep.subr.bf16.mxu0 0
      %1505 = vmatpush1.bf16.msra.mxu0 0
      %1506 = vmatprep.subr.bf16.mxu0 0
      %1507 = vmatpush1.bf16.msra.mxu0 0
      %1508 = vmatprep.subr.bf16.mxu0 0
      %1509 = vmatpush1.bf16.msra.mxu0 0
      %1510 = vmatprep.subr.bf16.mxu0 0
      %1511 = vmatpush1.bf16.msra.mxu0 0
      %1512 = vmatprep.subr.bf16.mxu0 0
      %1513 = vmatpush1.bf16.msra.mxu0 0
      %1514 = vmatprep.subr.bf16.mxu0 0
      %1515 = vmatpush1.bf16.msra.mxu0 0
      %1516 = vmatprep.subr.bf16.mxu0 0
      %1517 = vmatpush1.bf16.msra.mxu0 0
      %1518 = vmatprep.mubr.bf16.mxu0 0
      %1519 = vmatmul.mubr.bf16.gmra.mrb[0].mxu0 %v1475
      %v1520 = vpop.f32.mrb[0].mxu0
      %v1521 = vadd.f32 0.0, %v1520
      %v1522 = vpop.f32.mrb[0].mxu0
      %v1523 = vadd.f32 0.0, %v1522
      %v1524 = vpop.f32.mrb[0].mxu0
      %v1525 = vpop.f32.mrb[0].mxu0
      %1526 = vdwg.mxu0
      %1527 = vmatprep.subr.bf16.mxu0 0
      %1528 = vmatpush1.bf16.msra.mxu0 %v1484
      %1529 = vmatprep.subr.bf16.mxu0 0
      %1530 = vmatpush1.bf16.msra.mxu0 0
      %1531 = vmatprep.subr.bf16.mxu0 0
      %1532 = vmatpush1.bf16.msra.mxu0 0
      %1533 = vmatprep.subr.bf16.mxu0 0
      %1534 = vmatpush1.bf16.msra.mxu0 0
      %1535 = vmatprep.subr.bf16.mxu0 0
      %1536 = vmatpush1.bf16.msra.mxu0 0
      %1537 = vmatprep.subr.bf16.mxu0 0
      %1538 = vmatpush1.bf16.msra.mxu0 0
      %1539 = vmatprep.subr.bf16.mxu0 0
      %1540 = vmatpush1.bf16.msra.mxu0 0
      %1541 = vmatprep.subr.bf16.mxu0 0
      %1542 = vmatpush1.bf16.msra.mxu0 0
      %1543 = vmatprep.subr.bf16.mxu0 0
      %1544 = vmatpush1.bf16.msra.mxu0 0
      %1545 = vmatprep.subr.bf16.mxu0 0
      %1546 = vmatpush1.bf16.msra.mxu0 0
      %1547 = vmatprep.subr.bf16.mxu0 0
      %1548 = vmatpush1.bf16.msra.mxu0 0
      %1549 = vmatprep.subr.bf16.mxu0 0
      %1550 = vmatpush1.bf16.msra.mxu0 0
      %1551 = vmatprep.subr.bf16.mxu0 0
      %1552 = vmatpush1.bf16.msra.mxu0 0
      %1553 = vmatprep.subr.bf16.mxu0 0
      %1554 = vmatpush1.bf16.msra.mxu0 0
      %1555 = vmatprep.subr.bf16.mxu0 0
      %1556 = vmatpush1.bf16.msra.mxu0 0
      %1557 = vmatprep.subr.bf16.mxu0 0
      %1558 = vmatpush1.bf16.msra.mxu0 0
      %1559 = vmatprep.mubr.bf16.mxu0 0
      %1560 = vmatmul.mubr.bf16.gmra.mrb[0].mxu0 %v1475
      %v1561 = vpop.f32.mrb[0].mxu0
      %v1562 = vadd.f32 0.0, %v1561
      %v1563 = vpop.f32.mrb[0].mxu0
      %v1564 = vpop.f32.mrb[0].mxu0
      %v1565 = vpop.f32.mrb[0].mxu0
      %1566 = vdwg.mxu0
      %v1567 = vadd.f32 %v1456, %v1521
      %v1568 = vadd.f32 %v1457, %v1523
      %v1569 = vadd.f32 %v1458, %v1562
      %v1570 = vld [vmem:[%s319] sm:$0xff]
      %v1571 = vld [vmem:[%s319 + $0x8] sm:$0xf]
      %v1573 = vcombine.high %v1570, %v1570
      %v1575 = vadd.f32 %v1567, %v1570
      %v1576 = vadd.f32 %v1568, %v1573
      %v1577 = vadd.f32 %v1569, %v1571
      %v1580 = vcombine.low %v1575, %v1576
      %1582 = vst [vmem:[%s332] sm:$0xff] %v1580
      %1583 = vst [vmem:[%s332 + $0x8] sm:$0xf] %v1577
      %p1584 = scmp.lt.s32.totalorder %s18, 1
      %s1585 = scalar_select %p1584, %s18, 1
      %s1586 = smul.addr %s1585, 3
      %s1587 = smul.addr %s1586, 4
      %s1588 = scalar_lea.vmem %s7, %s1587
      // Predicated region
      $region49: #{middle_block_2d_forward.1} parent=47 // pred_check
        %p1589 = pneg %p203
      $region50: #{middle_block_2d_forward.1} parent=47 // pred_check_branch
        %1591 = sbr.rel (%p1589) target = $region52
      $region51: #{middle_block_2d_forward.1} parent=47 // pred_region
        _
      $region52: #{middle_block_2d_forward.1} parent=47 // pred_fallthru
        _
    $region48: #{middle_block_2d_forward.1} parent=5 // pred_fallthru
      _
    %p1592 = scmp.le.s32.totalorder 2, %s13
    // Predicated region
    $region53: #{middle_block_2d_forward.1} parent=5 // pred_check
      %p1593 = pneg %p1592
    $region54: #{middle_block_2d_forward.1} parent=5 // pred_check_branch
      %1595 = sbr.rel (%p1593) target = $region56
    $region55: #{middle_block_2d_forward.1} parent=5 // pred_region
      %s1596 = ssub.s32 %s13, 2
      // Predicated region
      $region57: #{middle_block_2d_forward.1} parent=55 // pred_check
        %p1597 = pneg %p209
      $region58: #{middle_block_2d_forward.1} parent=55 // pred_check_branch
        %1599 = sbr.rel (%p1597) target = $region60
      $region59: #{middle_block_2d_forward.1} parent=55 // pred_region
        %p1600 = scmp.lt.s32.totalorder %s19, 1
        %s1601 = scalar_select %p1600, %s19, 1
        %s1602 = smul.addr %s1601, 3
        %s1603 = smul.addr %s1602, 4
        %s1604 = scalar_lea.vmem %s7, %s1603
      $region60: #{middle_block_2d_forward.1} parent=55 // pred_fallthru
        _
    $region56: #{middle_block_2d_forward.1} parent=5 // pred_fallthru
      _
  $region6: #{middle_block_2d_forward.1} parent=0 // loop_footer
    %s17 = sadd.s32 1, %s13
  $region7: #{middle_block_2d_forward.1} parent=0 // loop_footer_branch
    %12 = sbr.rel target = $region3
  $region8: #{middle_block_2d_forward.1} parent=0 // loop_exit
    _

</llo_original>
